<compile_context>
chip_gen: v6e
topology: v6e:2x2x1
jax: 0.10.0
libtpu: 0.0.40
codegen_flags: <defaults>
</compile_context>

<pallas_src>
import functools

import jax
import jax.numpy as jnp
from jax import lax
from jax.experimental import pallas as pl
from jax.experimental.pallas import tpu as pltpu


def _conv_block_kernel(x_ref, w_ref, o_ref, xp_ref, *, K, pad, H, W, Cin, Cout,
                       norm, activation):
    # x_ref : (1, H, W, Cin)        bf16 unpadded input tile (one image)
    # w_ref : (K*K*Cin, Cout)       bf16 im2col weight (constant across grid)
    # o_ref : (1, H*W, Cout)        f32 output tile
    # xp_ref: (H+2p, W+2p, Cin)     f32 VMEM scratch: zero-padded image

    # ---- in-kernel zero padding: memset + interior copy (no wrapper jnp.pad) ----
    xp_ref[...] = jnp.zeros(xp_ref.shape, xp_ref.dtype)
    xp_ref[pad:pad + H, pad:pad + W, :] = x_ref[0].astype(jnp.float32)
    xp = xp_ref[...]

    # ---- im2col slab in VMEM: (H*W, K*K*Cin) ----
    # Tap k = (dy, dx) fills channel columns [k*Cin, (k+1)*Cin). Only one
    # materialisation pass of the data (vs. 9 separate matmul-operand
    # materialisations feeding 9 matmuls before). Slab is assembled in f32 and
    # cast to bf16 just before the MXU (exact, since the values came from bf16).
    cols = []
    for dy in range(K):
        row = xp[dy:dy + H]                              # cheap leading-dim slice
        for dx in range(K):
            patch = row[:, dx:dx + W, :]                 # (H, W, Cin)
            cols.append(patch.reshape(H * W, Cin))       # clean merge (W % 8 == 0)
    slab = jnp.concatenate(cols, axis=-1)                # (H*W, K*K*Cin) f32
    slab = slab.astype(jnp.bfloat16)

    # ---- single MXU matmul, fp32 accumulation ----
    acc = jnp.dot(slab, w_ref[...], preferred_element_type=jnp.float32)  # (H*W, Cout)

    # ---- optional InstanceNorm2d (affine=False), fused moments ----
    if norm == "in":
        inv_hw = 1.0 / (H * W)
        s1 = jnp.sum(acc, axis=0, keepdims=True)         # sum
        s2 = jnp.sum(acc * acc, axis=0, keepdims=True)   # sum of squares (same pass)
        mean = s1 * inv_hw
        var = s2 * inv_hw - mean * mean                  # E[x^2] - mean^2 (biased, like PyTorch)
        acc = (acc - mean) * lax.rsqrt(var + 1e-5)
    # TODO(synk): norm='bn' (training-mode batch stats across the whole batch)
    # needs a cross-grid reduction pass; not implemented here.

    # ---- activation ----
    if activation == "relu":
        acc = jnp.maximum(acc, 0.0)
    elif activation == "lrelu":
        acc = jnp.where(acc > 0.0, acc, 0.2 * acc)
    elif activation == "tanh":
        acc = jnp.tanh(acc)

    o_ref[0] = acc.astype(o_ref.dtype)


def conv_block(x_nchw, weight_oihw, *, norm="none", activation="none"):
    """ConvBlock forward. x_nchw: (N, Cin, H, W); weight_oihw: (Cout, Cin, K, K)."""
    if norm not in ("none", "in"):
        raise NotImplementedError("only norm in {'none','in'} supported in-kernel")
    if activation not in ("none", "relu", "lrelu", "tanh"):
        raise ValueError(f"Not recognised activation {activation}")
    N, Cin, H, W = x_nchw.shape
    Cout, _, K, _ = weight_oihw.shape
    pad = (K - 1) // 2
    Hp, Wp = H + 2 * pad, W + 2 * pad
    # NOTE: H*W = 256 per image already fills the MXU M dimension, so one image
    # per grid step is enough here (fold several images per step if H*W is tiny).

    # Layout glue (kept minimal): NCHW -> NHWC for the kernel, weights flattened
    # to the im2col RHS layout.  Operands are cast to bf16 (fp32 accumulation in
    # the kernel keeps accuracy).  No jnp.pad pass: padding happens in-kernel.
    x = jnp.transpose(x_nchw, (0, 2, 3, 1)).astype(jnp.bfloat16)            # (N,H,W,Cin)
    w = jnp.transpose(weight_oihw, (2, 3, 1, 0)).reshape(K * K * Cin, Cout)  # (KKCin,Cout)
    w = w.astype(jnp.bfloat16)

    kernel = functools.partial(
        _conv_block_kernel, K=K, pad=pad, H=H, W=W, Cin=Cin, Cout=Cout,
        norm=norm, activation=activation)

    out = pl.pallas_call(
        kernel,
        out_shape=jax.ShapeDtypeStruct((N, H * W, Cout), jnp.float32),
        grid_spec=pltpu.PrefetchScalarGridSpec(
            num_scalar_prefetch=0,
            grid=(N,),
            in_specs=[
                pl.BlockSpec((1, H, W, Cin), lambda n: (n, 0, 0, 0)),
                # constant block index -> weight stays VMEM-resident, never re-DMA'd
                pl.BlockSpec((K * K * Cin, Cout), lambda n: (0, 0)),
            ],
            out_specs=pl.BlockSpec((1, H * W, Cout), lambda n: (n, 0, 0)),
            scratch_shapes=[pltpu.VMEM((Hp, Wp, Cin), jnp.float32)],
        ),
        compiler_params=pltpu.CompilerParams(
            dimension_semantics=("parallel",),
            vmem_limit_bytes=32 * 1024 * 1024,
        ),
    )(x, w)

    # (N, H*W, Cout) -> (N, H, W, Cout) is a free reshape; final transpose back
    # to the module's NCHW convention (disappears in an NHWC end-to-end model).
    return jnp.transpose(out.reshape(N, H, W, Cout), (0, 3, 1, 2))


def _reference(x_nchw, weight_oihw, *, norm, activation):
    y = lax.conv_general_dilated(
        x_nchw, weight_oihw, window_strides=(1, 1), padding="SAME",
        dimension_numbers=("NCHW", "OIHW", "NCHW"),
        precision=lax.Precision.HIGHEST)
    if norm == "in":
        mean = jnp.mean(y, axis=(2, 3), keepdims=True)
        var = jnp.mean((y - mean) ** 2, axis=(2, 3), keepdims=True)
        y = (y - mean) * lax.rsqrt(var + 1e-5)
    if activation == "relu":
        y = jnp.maximum(y, 0.0)
    elif activation == "lrelu":
        y = jnp.where(y > 0.0, y, 0.2 * y)
    elif activation == "tanh":
        y = jnp.tanh(y)
    return y


if __name__ == "__main__":
    # Small shapes consistent with the module: batch=2, Cin=4, Cout=8, 16x16 spatial.
    N, Cin, Cout, H, W, K = 2, 4, 8, 16, 16, 3
    key = jax.random.PRNGKey(0)
    kx, kw = jax.random.split(key)
    x = jax.random.normal(kx, (N, Cin, H, W), dtype=jnp.float32)
    # Conv2d weight shape (Cout, Cin, K, K), bias=False.
    weight = jax.random.normal(kw, (Cout, Cin, K, K), dtype=jnp.float32) * 0.1

    norm, activation = "in", "lrelu"   # ConvBlock(4, 8, norm='in', activation='lrelu')
    out = conv_block(x, weight, norm=norm, activation=activation)
    out = jax.block_until_ready(out)

    # Reference computed on the same bf16-rounded operands: the kernel's bf16
    # MXU products with fp32 accumulation are exact for bf16 values, so this
    # comparison is tight (only summation-order differences remain).
    x_r = x.astype(jnp.bfloat16).astype(jnp.float32)
    w_r = weight.astype(jnp.bfloat16).astype(jnp.float32)
    ref = _reference(x_r, w_r, norm=norm, activation=activation)

    assert out.shape == (N, Cout, H, W)
    assert jnp.allclose(out, ref, rtol=5e-3, atol=5e-3), "mismatch vs reference"

    print("KERNEL_OK")
</pallas_src>

<mosaic_0001>
module attributes {stable_mosaic.version = 11 : i64} {
  func.func @_conv_block_kernel(%arg0: i32, %arg1: memref<1x16x16x4xbf16, #tpu.memory_space<vmem>>, %arg2: memref<36x8xbf16, #tpu.memory_space<vmem>>, %arg3: memref<1x256x8xf32, #tpu.memory_space<vmem>>, %arg4: memref<18x18x4xf32, #tpu.memory_space<vmem>>) attributes {dimension_semantics = [#tpu.dimension_semantics<parallel>], iteration_bounds = array<i64: 2>, scalar_prefetch = 0 : i64, scratch_operands = 1 : i64, tpu.core_type = #tpu.core_type<tc>, window_params = [{transform_indices = @transform_0, window_bounds = array<i64: 1, 16, 16, 4>}, {pipeline_mode = #tpu.pipeline_mode<synchronous>, transform_indices = @transform_1, window_bounds = array<i64: 36, 8>}, {transform_indices = @transform_2, window_bounds = array<i64: 1, 256, 8>}]} {
    %cst = arith.constant 0.000000e+00 : f32
    %0 = vector.broadcast %cst : f32 to vector<18x18x4xf32>
    %c0 = arith.constant 0 : index
    %c0_0 = arith.constant 0 : index
    %c0_1 = arith.constant 0 : index
    %1 = vector.load %arg4[%c0, %c0_0, %c0_1] : memref<18x18x4xf32, #tpu.memory_space<vmem>>, vector<18x18x4xf32>
    tpu.vector_store %arg4[%c0, %c0_0, %c0_1], %0 {strides = array<i32>} : memref<18x18x4xf32, #tpu.memory_space<vmem>>, vector<18x18x4xf32>,
    %c0_2 = arith.constant 0 : index
    %c0_3 = arith.constant 0 : index
    %c0_4 = arith.constant 0 : index
    %c0_5 = arith.constant 0 : index
    %2 = vector.load %arg1[%c0_2, %c0_3, %c0_4, %c0_5] : memref<1x16x16x4xbf16, #tpu.memory_space<vmem>>, vector<1x16x16x4xbf16>
    %3 = vector.shape_cast %2 : vector<1x16x16x4xbf16> to vector<16x16x4xbf16>
    %4 = arith.extf %3 : vector<16x16x4xbf16> to vector<16x16x4xf32>
    %c1 = arith.constant 1 : index
    %c1_6 = arith.constant 1 : index
    %c0_7 = arith.constant 0 : index
    %5 = vector.load %arg4[%c1, %c1_6, %c0_7] : memref<18x18x4xf32, #tpu.memory_space<vmem>>, vector<16x16x4xf32>
    tpu.vector_store %arg4[%c1, %c1_6, %c0_7], %4 {strides = array<i32>} : memref<18x18x4xf32, #tpu.memory_space<vmem>>, vector<16x16x4xf32>,
    %c0_8 = arith.constant 0 : index
    %c0_9 = arith.constant 0 : index
    %c0_10 = arith.constant 0 : index
    %6 = vector.load %arg4[%c0_8, %c0_9, %c0_10] : memref<18x18x4xf32, #tpu.memory_space<vmem>>, vector<18x18x4xf32>
    %7 = vector.extract_strided_slice %6 {offsets = [0, 0, 0], sizes = [16, 18, 4], strides = [1, 1, 1]} : vector<18x18x4xf32> to vector<16x18x4xf32>
    %8 = vector.extract_strided_slice %7 {offsets = [0, 0, 0], sizes = [16, 16, 4], strides = [1, 1, 1]} : vector<16x18x4xf32> to vector<16x16x4xf32>
    %9 = vector.shape_cast %8 : vector<16x16x4xf32> to vector<256x4xf32>
    %10 = vector.extract_strided_slice %7 {offsets = [0, 1, 0], sizes = [16, 16, 4], strides = [1, 1, 1]} : vector<16x18x4xf32> to vector<16x16x4xf32>
    %11 = vector.shape_cast %10 : vector<16x16x4xf32> to vector<256x4xf32>
    %12 = vector.extract_strided_slice %7 {offsets = [0, 2, 0], sizes = [16, 16, 4], strides = [1, 1, 1]} : vector<16x18x4xf32> to vector<16x16x4xf32>
    %13 = vector.shape_cast %12 : vector<16x16x4xf32> to vector<256x4xf32>
    %14 = vector.extract_strided_slice %6 {offsets = [1, 0, 0], sizes = [16, 18, 4], strides = [1, 1, 1]} : vector<18x18x4xf32> to vector<16x18x4xf32>
    %15 = vector.extract_strided_slice %14 {offsets = [0, 0, 0], sizes = [16, 16, 4], strides = [1, 1, 1]} : vector<16x18x4xf32> to vector<16x16x4xf32>
    %16 = vector.shape_cast %15 : vector<16x16x4xf32> to vector<256x4xf32>
    %17 = vector.extract_strided_slice %14 {offsets = [0, 1, 0], sizes = [16, 16, 4], strides = [1, 1, 1]} : vector<16x18x4xf32> to vector<16x16x4xf32>
    %18 = vector.shape_cast %17 : vector<16x16x4xf32> to vector<256x4xf32>
    %19 = vector.extract_strided_slice %14 {offsets = [0, 2, 0], sizes = [16, 16, 4], strides = [1, 1, 1]} : vector<16x18x4xf32> to vector<16x16x4xf32>
    %20 = vector.shape_cast %19 : vector<16x16x4xf32> to vector<256x4xf32>
    %21 = vector.extract_strided_slice %6 {offsets = [2, 0, 0], sizes = [16, 18, 4], strides = [1, 1, 1]} : vector<18x18x4xf32> to vector<16x18x4xf32>
    %22 = vector.extract_strided_slice %21 {offsets = [0, 0, 0], sizes = [16, 16, 4], strides = [1, 1, 1]} : vector<16x18x4xf32> to vector<16x16x4xf32>
    %23 = vector.shape_cast %22 : vector<16x16x4xf32> to vector<256x4xf32>
    %24 = vector.extract_strided_slice %21 {offsets = [0, 1, 0], sizes = [16, 16, 4], strides = [1, 1, 1]} : vector<16x18x4xf32> to vector<16x16x4xf32>
    %25 = vector.shape_cast %24 : vector<16x16x4xf32> to vector<256x4xf32>
    %26 = vector.extract_strided_slice %21 {offsets = [0, 2, 0], sizes = [16, 16, 4], strides = [1, 1, 1]} : vector<16x18x4xf32> to vector<16x16x4xf32>
    %27 = vector.shape_cast %26 : vector<16x16x4xf32> to vector<256x4xf32>
    %28 = tpu.concatenate %9, %11, %13, %16, %18, %20, %23, %25, %27 in 1 : vector<256x4xf32>, vector<256x4xf32>, vector<256x4xf32>, vector<256x4xf32>, vector<256x4xf32>, vector<256x4xf32>, vector<256x4xf32>, vector<256x4xf32>, vector<256x4xf32> -> vector<256x36xf32>
    %29 = arith.truncf %28 : vector<256x36xf32> to vector<256x36xbf16>
    %c0_11 = arith.constant 0 : index
    %c0_12 = arith.constant 0 : index
    %30 = vector.load %arg2[%c0_11, %c0_12] : memref<36x8xbf16, #tpu.memory_space<vmem>>, vector<36x8xbf16>
    %cst_13 = arith.constant dense<0.000000e+00> : vector<256x8xf32>
    %31 = tpu.matmul %29, %30, %cst_13 {dimension_numbers = #tpu.dot_dimension_numbers<[1], [0], [0], [1], [0, 0, 1, 1], [], []>} : vector<256x36xbf16>, vector<36x8xbf16>, vector<256x8xf32> -> vector<256x8xf32>
    %cst_14 = arith.constant dense<0.000000e+00> : vector<8xf32>
    %32 = vector.multi_reduction <add>, %31, %cst_14 [0] : vector<256x8xf32> to vector<8xf32>
    %33 = vector.shape_cast %32 : vector<8xf32> to vector<1x8xf32>
    %34 = arith.mulf %31, %31 : vector<256x8xf32>
    %cst_15 = arith.constant dense<0.000000e+00> : vector<8xf32>
    %35 = vector.multi_reduction <add>, %34, %cst_15 [0] : vector<256x8xf32> to vector<8xf32>
    %36 = vector.shape_cast %35 : vector<8xf32> to vector<1x8xf32>
    %cst_16 = arith.constant 3.906250e-03 : f32
    %37 = vector.broadcast %cst_16 : f32 to vector<1x8xf32>
    %38 = arith.mulf %33, %37 : vector<1x8xf32>
    %cst_17 = arith.constant 3.906250e-03 : f32
    %39 = vector.broadcast %cst_17 : f32 to vector<1x8xf32>
    %40 = arith.mulf %36, %39 : vector<1x8xf32>
    %41 = arith.mulf %38, %38 : vector<1x8xf32>
    %42 = arith.subf %40, %41 : vector<1x8xf32>
    %43 = vector.broadcast %38 : vector<1x8xf32> to vector<256x8xf32>
    %44 = arith.subf %31, %43 : vector<256x8xf32>
    %cst_18 = arith.constant 9.99999974E-6 : f32
    %45 = vector.broadcast %cst_18 : f32 to vector<1x8xf32>
    %46 = arith.addf %42, %45 : vector<1x8xf32>
    %47 = math.rsqrt %46 : vector<1x8xf32>
    %48 = vector.broadcast %47 : vector<1x8xf32> to vector<256x8xf32>
    %49 = arith.mulf %44, %48 : vector<256x8xf32>
    %cst_19 = arith.constant 0.000000e+00 : f32
    %50 = vector.broadcast %cst_19 : f32 to vector<256x8xf32>
    %51 = arith.cmpf ogt, %49, %50 : vector<256x8xf32>
    %cst_20 = arith.constant 2.000000e-01 : f32
    %52 = vector.broadcast %cst_20 : f32 to vector<256x8xf32>
    %53 = arith.mulf %52, %49 : vector<256x8xf32>
    %54 = arith.select %51, %49, %53 : vector<256x8xi1>, vector<256x8xf32>
    %c0_21 = arith.constant 0 : index
    %c0_22 = arith.constant 0 : index
    %c0_23 = arith.constant 0 : index
    %55 = vector.load %arg3[%c0_21, %c0_22, %c0_23] : memref<1x256x8xf32, #tpu.memory_space<vmem>>, vector<1x256x8xf32>
    %56 = vector.shape_cast %55 : vector<1x256x8xf32> to vector<256x8xf32>
    %57 = vector.shape_cast %54 : vector<256x8xf32> to vector<1x256x8xf32>
    tpu.vector_store %arg3[%c0_21, %c0_22, %c0_23], %57 {strides = array<i32>} : memref<1x256x8xf32, #tpu.memory_space<vmem>>, vector<1x256x8xf32>,
    return
  }
  func.func @transform_0(%arg0: i32) -> (i32, i32, i32, i32) {
    %c0_i32 = arith.constant 0 : i32
    %c0_i32_0 = arith.constant 0 : i32
    %c0_i32_1 = arith.constant 0 : i32
    %c0_i32_2 = arith.constant 0 : i32
    return %arg0, %c0_i32, %c0_i32_0, %c0_i32_1 : i32, i32, i32, i32
  }
  func.func @transform_1(%arg0: i32) -> (i32, i32) {
    %c0_i32 = arith.constant 0 : i32
    %c0_i32_0 = arith.constant 0 : i32
    %c0_i32_1 = arith.constant 0 : i32
    return %c0_i32, %c0_i32_0 : i32, i32
  }
  func.func @transform_2(%arg0: i32) -> (i32, i32, i32) {
    %c0_i32 = arith.constant 0 : i32
    %c0_i32_0 = arith.constant 0 : i32
    %c0_i32_1 = arith.constant 0 : i32
    return %arg0, %c0_i32, %c0_i32_0 : i32, i32, i32
  }
}

</mosaic_0001>

<llo_original>
// kernel: tpu_custom_call.1
$region0: #{tpu_custom_call.1}
  #allocation0 [shape = 'u32[]', space=smem, size = 0x4, offset = 0x4, fixed_abs, tag = 'smem constant byte address 0x4 - core index']
  #allocation1 [shape = 'u32[144,128]{1,0:T(1,128)}', space=vmem, size = 0x12000, scoped, tag = 'internal scratch']
  #allocation2 [shape = 'f32[18,18,4]{2,1,0:T(8,128)}', space=vmem, size = 0x36000, scoped, tag = 'scratch operand']
  %s0 = inlined_call_operand.vmem [shape: bf16[2,16,16,4], index: 0, kind: input, shape index: {}]
  %s1 = inlined_call_operand.vmem [shape: bf16[36,8], index: 1, kind: input, shape index: {}]
  %s2 = inlined_call_operand.vmem [shape: f32[2,256,8], index: 2, kind: output, shape index: {}]
  %s3 = sld [smem:[#allocation0]]
  $region41: #{tpu_custom_call.1} parent=0
    _
  %s5 = ssub.s32 1, %s3
  %s6 = scalar_select 0, %s5, %s3
  loop: start=0, step=1, limit=4
  $region2: #{tpu_custom_call.1} parent=0 // loop_pre_header
    _
  $region3: #{tpu_custom_call.1} parent=0 // loop_header
    %s8 = sphi 0, %s12
    %p9 = scmp.ge.s32.totalorder %s8, 4
    %s18 = sphi 0, %s20
    %s21 = sphi 0, %s18
    %s22 = sphi 0, %s21
    %s38 = sphi 0, %s22
    %s42 = sphi 0, %s42
    %s44 = sphi 0, %s42
    %s45 = sphi 0, %s44
    %s59 = sphi 0, %s45
    %s65 = sphi 0, %s67
    %s68 = sphi 0, %s65
    %s69 = sphi 0, %s68
    %s85 = sphi 0, %s69
  $region4: #{tpu_custom_call.1} parent=0 // loop_header_branch
    %11 = sbr.rel (%p9) target = $region8
  $region5: #{tpu_custom_call.1} parent=0 // loop_body
    %s13 = ssub.s32 %s8, 1
    %s14 = ssub.s32 %s8, 2
    %s15 = sadd.s32 %s8, 1
    %s16 = ssub.s32 %s8, %s15
    %p17 = scmp.eq.s32.totalorder %s16, 0
    %s19 = sadd.s32 %s18, 1
    %s20 = scalar_select %p17, %s18, %s19
    %p23 = pneg %p17
    %p24 = scmp.eq.s32.totalorder %s8, 1
    %p25 = por %p23, %p24
    %p26 = scmp.ne.s32.totalorder %s18, %s21
    %p27 = scmp.eq.s32.totalorder %s8, 0
    %p28 = por %p26, %p27
    %p29 = scmp.ne.s32.totalorder %s18, %s21
    %p30 = scmp.eq.s32.totalorder %s13, 1
    %p31 = por %p29, %p30
    %p32 = scmp.ne.s32.totalorder %s21, %s22
    %p33 = scmp.eq.s32.totalorder %s13, 0
    %p34 = por %p32, %p33
    %p35 = scmp.ne.s32.totalorder %s21, %s22
    %p36 = scmp.eq.s32.totalorder %s14, 1
    %p37 = por %p35, %p36
    %p39 = scmp.ne.s32.totalorder %s22, %s38
    %p40 = scmp.eq.s32.totalorder %s14, 0
    %p41 = por %p39, %p40
    %s43 = sadd.s32 %s42, 1
    %p46 = scmp.eq.s32.totalorder %s8, 1
    %p47 = scmp.ne.s32.totalorder %s42, %s44
    %p48 = scmp.eq.s32.totalorder %s8, 0
    %p49 = por %p47, %p48
    %p50 = scmp.ne.s32.totalorder %s42, %s44
    %p51 = scmp.eq.s32.totalorder %s13, 1
    %p52 = por %p50, %p51
    %p53 = scmp.ne.s32.totalorder %s44, %s45
    %p54 = scmp.eq.s32.totalorder %s13, 0
    %p55 = por %p53, %p54
    %p56 = scmp.ne.s32.totalorder %s44, %s45
    %p57 = scmp.eq.s32.totalorder %s14, 1
    %p58 = por %p56, %p57
    %p60 = scmp.ne.s32.totalorder %s45, %s59
    %p61 = scmp.eq.s32.totalorder %s14, 0
    %p62 = por %p60, %p61
    %s63 = ssub.s32 %s8, %s15
    %p64 = scmp.eq.s32.totalorder %s63, 0
    %s66 = sadd.s32 %s65, 1
    %s67 = scalar_select %p64, %s65, %s66
    %p70 = pneg %p64
    %p71 = scmp.eq.s32.totalorder %s8, 1
    %p72 = por %p70, %p71
    %p73 = scmp.ne.s32.totalorder %s65, %s68
    %p74 = scmp.eq.s32.totalorder %s8, 0
    %p75 = por %p73, %p74
    %p76 = scmp.ne.s32.totalorder %s65, %s68
    %p77 = scmp.eq.s32.totalorder %s13, 1
    %p78 = por %p76, %p77
    %p79 = scmp.ne.s32.totalorder %s68, %s69
    %p80 = scmp.eq.s32.totalorder %s13, 0
    %p81 = por %p79, %p80
    %p82 = scmp.ne.s32.totalorder %s68, %s69
    %p83 = scmp.eq.s32.totalorder %s14, 1
    %p84 = por %p82, %p83
    %p86 = scmp.ne.s32.totalorder %s69, %s85
    %p87 = scmp.eq.s32.totalorder %s14, 0
    %p88 = por %p86, %p87
    %p89 = scmp.le.s32.totalorder 1, %s8
    %p90 = scmp.lt.s32.totalorder %s8, 3
    %p91 = pnand %p89, %p90
    %p92 = pneg %p91
    // Predicated region
    $region9: #{tpu_custom_call.1} parent=5 // pred_check
      _
    $region10: #{tpu_custom_call.1} parent=5 // pred_check_branch
      %94 = sbr.rel (%p91) target = $region12
    $region11: #{tpu_custom_call.1} parent=5 // pred_region
      %s95 = ssub.s32 %s8, 1
      // Predicated region
      $region13: #{tpu_custom_call.1} parent=11 // pred_check
        %p96 = pneg %p55
      $region14: #{tpu_custom_call.1} parent=11 // pred_check_branch
        %98 = sbr.rel (%p96) target = $region16
      $region15: #{tpu_custom_call.1} parent=11 // pred_region
        _
      $region16: #{tpu_custom_call.1} parent=11 // pred_fallthru
        _
    $region12: #{tpu_custom_call.1} parent=5 // pred_fallthru
      _
    %p99 = scmp.lt.s32.totalorder %s8, 2
    // Predicated region
    $region17: #{tpu_custom_call.1} parent=5 // pred_check
      %p100 = pneg %p99
    $region18: #{tpu_custom_call.1} parent=5 // pred_check_branch
      %102 = sbr.rel (%p100) target = $region20
    $region19: #{tpu_custom_call.1} parent=5 // pred_region
      // Predicated region
      $region21: #{tpu_custom_call.1} parent=19 // pred_check
        %p103 = pneg %p28
      $region22: #{tpu_custom_call.1} parent=19 // pred_check_branch
        %105 = sbr.rel (%p103) target = $region24
      $region23: #{tpu_custom_call.1} parent=19 // pred_region
        %p106 = scmp.lt.s32.totalorder %s8, 1
        %s107 = scalar_select %p106, %s8, 1
        %s108 = smul.addr %s107, 32
        %s109 = smul.addr %s108, 4
        %s110 = scalar_lea.vmem %s0, %s109
      $region24: #{tpu_custom_call.1} parent=19 // pred_fallthru
        _
    $region20: #{tpu_custom_call.1} parent=5 // pred_fallthru
      _
    %p111 = scmp.le.s32.totalorder 1, %s8
    %p112 = scmp.lt.s32.totalorder %s8, 3
    %p113 = pnand %p111, %p112
    %p114 = pneg %p113
    // Predicated region
    $region25: #{tpu_custom_call.1} parent=5 // pred_check
      _
    $region26: #{tpu_custom_call.1} parent=5 // pred_check_branch
      %116 = sbr.rel (%p113) target = $region28
    $region27: #{tpu_custom_call.1} parent=5 // pred_region
      %s117 = ssub.s32 %s8, 1
      %p118 = scmp.lt.s32.totalorder %s13, 1
      %s119 = scalar_select %p118, %s13, 1
      %s120 = smul.addr %s119, 32
      %s121 = smul.addr %s120, 4
      %s122 = scalar_lea.vmem %s0, %s121
      %p123 = pneg %p34
      %p124 = pneg %p31
      %p125 = pneg %p55
      %p126 = pneg %p52
      %p127 = pneg %p81
      %p128 = pneg %p78
      %p129 = scmp.lt.s32.totalorder %s13, 1
      %s130 = scalar_select %p129, %s13, 1
      %s131 = smul.addr %s130, 32
      %s132 = smul.addr %s131, 8
      %s133 = scalar_lea.vmem %s2, %s132
      %p134 = scmp.lt.s32.totalorder %s13, 1
      %s135 = scalar_select %p134, %s13, 1
      %s136 = smul.addr %s135, 32
      %s137 = smul.addr %s136, 4
      %s138 = scalar_lea.vmem %s0, %s137
      %p139 = scmp.lt.s32.totalorder %s13, 1
      %s140 = scalar_select %p139, %s13, 1
      %s141 = smul.addr %s140, 32
      %s142 = smul.addr %s141, 8
      %s143 = scalar_lea.vmem %s2, %s142
      %vm145 = vcmask 31744
      %146 = vst.msk [vmem:[#allocation2] sm:$0xff] %vm145, 0.0
      %147 = vst.msk [vmem:[#allocation2 + $0x8] sm:$0xff] %vm145, 0.0
      %vm148 = vcmask 25600
      %149 = vst.msk [vmem:[#allocation2 + $0x10] sm:$0x3] %vm148, 0.0
      %150 = vst.msk [vmem:[#allocation2 + $0x18] sm:$0xff] %vm145, 0.0
      %151 = vst.msk [vmem:[#allocation2 + $0x20] sm:$0xff] %vm145, 0.0
      %152 = vst.msk [vmem:[#allocation2 + $0x28] sm:$0x3] %vm148, 0.0
      %153 = vst.msk [vmem:[#allocation2 + $0x30] sm:$0xff] %vm145, 0.0
      %154 = vst.msk [vmem:[#allocation2 + $0x38] sm:$0xff] %vm145, 0.0
      %155 = vst.msk [vmem:[#allocation2 + $0x40] sm:$0x3] %vm148, 0.0
      %156 = vst.msk [vmem:[#allocation2 + $0x48] sm:$0xff] %vm145, 0.0
      %157 = vst.msk [vmem:[#allocation2 + $0x50] sm:$0xff] %vm145, 0.0
      %158 = vst.msk [vmem:[#allocation2 + $0x58] sm:$0x3] %vm148, 0.0
      %159 = vst.msk [vmem:[#allocation2 + $0x60] sm:$0xff] %vm145, 0.0
      %160 = vst.msk [vmem:[#allocation2 + $0x68] sm:$0xff] %vm145, 0.0
      %161 = vst.msk [vmem:[#allocation2 + $0x70] sm:$0x3] %vm148, 0.0
      %162 = vst.msk [vmem:[#allocation2 + $0x78] sm:$0xff] %vm145, 0.0
      %163 = vst.msk [vmem:[#allocation2 + $0x80] sm:$0xff] %vm145, 0.0
      %164 = vst.msk [vmem:[#allocation2 + $0x88] sm:$0x3] %vm148, 0.0
      %165 = vst.msk [vmem:[#allocation2 + $0x90] sm:$0xff] %vm145, 0.0
      %166 = vst.msk [vmem:[#allocation2 + $0x98] sm:$0xff] %vm145, 0.0
      %167 = vst.msk [vmem:[#allocation2 + $0xa0] sm:$0x3] %vm148, 0.0
      %168 = vst.msk [vmem:[#allocation2 + $0xa8] sm:$0xff] %vm145, 0.0
      %169 = vst.msk [vmem:[#allocation2 + $0xb0] sm:$0xff] %vm145, 0.0
      %170 = vst.msk [vmem:[#allocation2 + $0xb8] sm:$0x3] %vm148, 0.0
      %171 = vst.msk [vmem:[#allocation2 + $0xc0] sm:$0xff] %vm145, 0.0
      %172 = vst.msk [vmem:[#allocation2 + $0xc8] sm:$0xff] %vm145, 0.0
      %173 = vst.msk [vmem:[#allocation2 + $0xd0] sm:$0x3] %vm148, 0.0
      %174 = vst.msk [vmem:[#allocation2 + $0xd8] sm:$0xff] %vm145, 0.0
      %175 = vst.msk [vmem:[#allocation2 + $0xe0] sm:$0xff] %vm145, 0.0
      %176 = vst.msk [vmem:[#allocation2 + $0xe8] sm:$0x3] %vm148, 0.0
      %177 = vst.msk [vmem:[#allocation2 + $0xf0] sm:$0xff] %vm145, 0.0
      %178 = vst.msk [vmem:[#allocation2 + $0xf8] sm:$0xff] %vm145, 0.0
      %179 = vst.msk [vmem:[#allocation2 + $0x100] sm:$0x3] %vm148, 0.0
      %180 = vst.msk [vmem:[#allocation2 + $0x108] sm:$0xff] %vm145, 0.0
      %181 = vst.msk [vmem:[#allocation2 + $0x110] sm:$0xff] %vm145, 0.0
      %182 = vst.msk [vmem:[#allocation2 + $0x118] sm:$0x3] %vm148, 0.0
      %183 = vst.msk [vmem:[#allocation2 + $0x120] sm:$0xff] %vm145, 0.0
      %184 = vst.msk [vmem:[#allocation2 + $0x128] sm:$0xff] %vm145, 0.0
      %185 = vst.msk [vmem:[#allocation2 + $0x130] sm:$0x3] %vm148, 0.0
      %186 = vst.msk [vmem:[#allocation2 + $0x138] sm:$0xff] %vm145, 0.0
      %187 = vst.msk [vmem:[#allocation2 + $0x140] sm:$0xff] %vm145, 0.0
      %188 = vst.msk [vmem:[#allocation2 + $0x148] sm:$0x3] %vm148, 0.0
      %189 = vst.msk [vmem:[#allocation2 + $0x150] sm:$0xff] %vm145, 0.0
      %190 = vst.msk [vmem:[#allocation2 + $0x158] sm:$0xff] %vm145, 0.0
      %191 = vst.msk [vmem:[#allocation2 + $0x160] sm:$0x3] %vm148, 0.0
      %192 = vst.msk [vmem:[#allocation2 + $0x168] sm:$0xff] %vm145, 0.0
      %193 = vst.msk [vmem:[#allocation2 + $0x170] sm:$0xff] %vm145, 0.0
      %194 = vst.msk [vmem:[#allocation2 + $0x178] sm:$0x3] %vm148, 0.0
      %195 = vst.msk [vmem:[#allocation2 + $0x180] sm:$0xff] %vm145, 0.0
      %196 = vst.msk [vmem:[#allocation2 + $0x188] sm:$0xff] %vm145, 0.0
      %197 = vst.msk [vmem:[#allocation2 + $0x190] sm:$0x3] %vm148, 0.0
      %198 = vst.msk [vmem:[#allocation2 + $0x198] sm:$0xff] %vm145, 0.0
      %199 = vst.msk [vmem:[#allocation2 + $0x1a0] sm:$0xff] %vm145, 0.0
      %200 = vst.msk [vmem:[#allocation2 + $0x1a8] sm:$0x3] %vm148, 0.0
      %v201 = vld [vmem:[%s138] sm:$0xf]
      %v202 = vld [vmem:[%s138 + $0x4] sm:$0xf]
      %v203 = vld [vmem:[%s138 + $0x8] sm:$0xf]
      %v204 = vld [vmem:[%s138 + $0xc] sm:$0xf]
      %v205 = vld [vmem:[%s138 + $0x10] sm:$0xf]
      %v206 = vld [vmem:[%s138 + $0x14] sm:$0xf]
      %v207 = vld [vmem:[%s138 + $0x18] sm:$0xf]
      %v208 = vld [vmem:[%s138 + $0x1c] sm:$0xf]
      %v209 = vld [vmem:[%s138 + $0x20] sm:$0xf]
      %v210 = vld [vmem:[%s138 + $0x24] sm:$0xf]
      %v211 = vld [vmem:[%s138 + $0x28] sm:$0xf]
      %v212 = vld [vmem:[%s138 + $0x2c] sm:$0xf]
      %v213 = vld [vmem:[%s138 + $0x30] sm:$0xf]
      %v214 = vld [vmem:[%s138 + $0x34] sm:$0xf]
      %v215 = vld [vmem:[%s138 + $0x38] sm:$0xf]
      %v216 = vld [vmem:[%s138 + $0x3c] sm:$0xf]
      %v217 = vld [vmem:[%s138 + $0x40] sm:$0xf]
      %v218 = vld [vmem:[%s138 + $0x44] sm:$0xf]
      %v219 = vld [vmem:[%s138 + $0x48] sm:$0xf]
      %v220 = vld [vmem:[%s138 + $0x4c] sm:$0xf]
      %v221 = vld [vmem:[%s138 + $0x50] sm:$0xf]
      %v222 = vld [vmem:[%s138 + $0x54] sm:$0xf]
      %v223 = vld [vmem:[%s138 + $0x58] sm:$0xf]
      %v224 = vld [vmem:[%s138 + $0x5c] sm:$0xf]
      %v225 = vld [vmem:[%s138 + $0x60] sm:$0xf]
      %v226 = vld [vmem:[%s138 + $0x64] sm:$0xf]
      %v227 = vld [vmem:[%s138 + $0x68] sm:$0xf]
      %v228 = vld [vmem:[%s138 + $0x6c] sm:$0xf]
      %v229 = vld [vmem:[%s138 + $0x70] sm:$0xf]
      %v230 = vld [vmem:[%s138 + $0x74] sm:$0xf]
      %v231 = vld [vmem:[%s138 + $0x78] sm:$0xf]
      %v232 = vld [vmem:[%s138 + $0x7c] sm:$0xf]
      %v233 = vunpack.c.l.bf16 %v201
      %v234 = vunpack.c.l.bf16 %v202
      %v235 = vunpack.c.l.bf16 %v203
      %v236 = vunpack.c.l.bf16 %v204
      %v237 = vunpack.c.l.bf16 %v205
      %v238 = vunpack.c.l.bf16 %v206
      %v239 = vunpack.c.l.bf16 %v207
      %v240 = vunpack.c.l.bf16 %v208
      %v241 = vunpack.c.l.bf16 %v209
      %v242 = vunpack.c.l.bf16 %v210
      %v243 = vunpack.c.l.bf16 %v211
      %v244 = vunpack.c.l.bf16 %v212
      %v245 = vunpack.c.l.bf16 %v213
      %v246 = vunpack.c.l.bf16 %v214
      %v247 = vunpack.c.l.bf16 %v215
      %v248 = vunpack.c.l.bf16 %v216
      %v249 = vunpack.c.l.bf16 %v217
      %v250 = vunpack.c.l.bf16 %v218
      %v251 = vunpack.c.l.bf16 %v219
      %v252 = vunpack.c.l.bf16 %v220
      %v253 = vunpack.c.l.bf16 %v221
      %v254 = vunpack.c.l.bf16 %v222
      %v255 = vunpack.c.l.bf16 %v223
      %v256 = vunpack.c.l.bf16 %v224
      %v257 = vunpack.c.l.bf16 %v225
      %v258 = vunpack.c.l.bf16 %v226
      %v259 = vunpack.c.l.bf16 %v227
      %v260 = vunpack.c.l.bf16 %v228
      %v261 = vunpack.c.l.bf16 %v229
      %v262 = vunpack.c.l.bf16 %v230
      %v263 = vunpack.c.l.bf16 %v231
      %v264 = vunpack.c.l.bf16 %v232
      %s265 = scalar_lea.vmem [#allocation2], 24
      %266 = vst.msk [vmem:[%s265 + $0x1] sm:$0xff] %vm145, %v233
      %267 = vst.msk [vmem:[%s265 + $0x9] sm:$0xff] %vm145, %v234
      %268 = vst.msk [vmem:[%s265 + $0x19] sm:$0xff] %vm145, %v235
      %269 = vst.msk [vmem:[%s265 + $0x21] sm:$0xff] %vm145, %v236
      %270 = vst.msk [vmem:[%s265 + $0x31] sm:$0xff] %vm145, %v237
      %271 = vst.msk [vmem:[%s265 + $0x39] sm:$0xff] %vm145, %v238
      %272 = vst.msk [vmem:[%s265 + $0x49] sm:$0xff] %vm145, %v239
      %273 = vst.msk [vmem:[%s265 + $0x51] sm:$0xff] %vm145, %v240
      %274 = vst.msk [vmem:[%s265 + $0x61] sm:$0xff] %vm145, %v241
      %275 = vst.msk [vmem:[%s265 + $0x69] sm:$0xff] %vm145, %v242
      %276 = vst.msk [vmem:[%s265 + $0x79] sm:$0xff] %vm145, %v243
      %277 = vst.msk [vmem:[%s265 + $0x81] sm:$0xff] %vm145, %v244
      %278 = vst.msk [vmem:[%s265 + $0x91] sm:$0xff] %vm145, %v245
      %279 = vst.msk [vmem:[%s265 + $0x99] sm:$0xff] %vm145, %v246
      %280 = vst.msk [vmem:[%s265 + $0xa9] sm:$0xff] %vm145, %v247
      %281 = vst.msk [vmem:[%s265 + $0xb1] sm:$0xff] %vm145, %v248
      %282 = vst.msk [vmem:[%s265 + $0xc1] sm:$0xff] %vm145, %v249
      %283 = vst.msk [vmem:[%s265 + $0xc9] sm:$0xff] %vm145, %v250
      %284 = vst.msk [vmem:[%s265 + $0xd9] sm:$0xff] %vm145, %v251
      %285 = vst.msk [vmem:[%s265 + $0xe1] sm:$0xff] %vm145, %v252
      %286 = vst.msk [vmem:[%s265 + $0xf1] sm:$0xff] %vm145, %v253
      %287 = vst.msk [vmem:[%s265 + $0xf9] sm:$0xff] %vm145, %v254
      %288 = vst.msk [vmem:[%s265 + $0x109] sm:$0xff] %vm145, %v255
      %289 = vst.msk [vmem:[%s265 + $0x111] sm:$0xff] %vm145, %v256
      %290 = vst.msk [vmem:[%s265 + $0x121] sm:$0xff] %vm145, %v257
      %291 = vst.msk [vmem:[%s265 + $0x129] sm:$0xff] %vm145, %v258
      %292 = vst.msk [vmem:[%s265 + $0x139] sm:$0xff] %vm145, %v259
      %293 = vst.msk [vmem:[%s265 + $0x141] sm:$0xff] %vm145, %v260
      %294 = vst.msk [vmem:[%s265 + $0x151] sm:$0xff] %vm145, %v261
      %295 = vst.msk [vmem:[%s265 + $0x159] sm:$0xff] %vm145, %v262
      %296 = vst.msk [vmem:[%s265 + $0x169] sm:$0xff] %vm145, %v263
      %297 = vst.msk [vmem:[%s265 + $0x171] sm:$0xff] %vm145, %v264
      %v298 = vld [vmem:[#allocation2] sm:$0xff]
      %v299 = vld [vmem:[#allocation2 + $0x8] sm:$0xff]
      %v300 = vld [vmem:[#allocation2 + $0x10] sm:$0x3]
      %v301 = vld [vmem:[#allocation2 + $0x18] sm:$0xff]
      %v302 = vld [vmem:[#allocation2 + $0x20] sm:$0xff]
      %v303 = vld [vmem:[#allocation2 + $0x28] sm:$0x3]
      %v304 = vld [vmem:[#allocation2 + $0x30] sm:$0xff]
      %v305 = vld [vmem:[#allocation2 + $0x38] sm:$0xff]
      %v306 = vld [vmem:[#allocation2 + $0x40] sm:$0x3]
      %v307 = vld [vmem:[#allocation2 + $0x48] sm:$0xff]
      %v308 = vld [vmem:[#allocation2 + $0x50] sm:$0xff]
      %v309 = vld [vmem:[#allocation2 + $0x58] sm:$0x3]
      %v310 = vld [vmem:[#allocation2 + $0x60] sm:$0xff]
      %v311 = vld [vmem:[#allocation2 + $0x68] sm:$0xff]
      %v312 = vld [vmem:[#allocation2 + $0x70] sm:$0x3]
      %v313 = vld [vmem:[#allocation2 + $0x78] sm:$0xff]
      %v314 = vld [vmem:[#allocation2 + $0x80] sm:$0xff]
      %v315 = vld [vmem:[#allocation2 + $0x88] sm:$0x3]
      %v316 = vld [vmem:[#allocation2 + $0x90] sm:$0xff]
      %v317 = vld [vmem:[#allocation2 + $0x98] sm:$0xff]
      %v318 = vld [vmem:[#allocation2 + $0xa0] sm:$0x3]
      %v319 = vld [vmem:[#allocation2 + $0xa8] sm:$0xff]
      %v320 = vld [vmem:[#allocation2 + $0xb0] sm:$0xff]
      %v321 = vld [vmem:[#allocation2 + $0xb8] sm:$0x3]
      %v322 = vld [vmem:[#allocation2 + $0xc0] sm:$0xff]
      %v323 = vld [vmem:[#allocation2 + $0xc8] sm:$0xff]
      %v324 = vld [vmem:[#allocation2 + $0xd0] sm:$0x3]
      %v325 = vld [vmem:[#allocation2 + $0xd8] sm:$0xff]
      %v326 = vld [vmem:[#allocation2 + $0xe0] sm:$0xff]
      %v327 = vld [vmem:[#allocation2 + $0xe8] sm:$0x3]
      %v328 = vld [vmem:[#allocation2 + $0xf0] sm:$0xff]
      %v329 = vld [vmem:[#allocation2 + $0xf8] sm:$0xff]
      %v330 = vld [vmem:[#allocation2 + $0x100] sm:$0x3]
      %v331 = vld [vmem:[#allocation2 + $0x108] sm:$0xff]
      %v332 = vld [vmem:[#allocation2 + $0x110] sm:$0xff]
      %v333 = vld [vmem:[#allocation2 + $0x118] sm:$0x3]
      %v334 = vld [vmem:[#allocation2 + $0x120] sm:$0xff]
      %v335 = vld [vmem:[#allocation2 + $0x128] sm:$0xff]
      %v336 = vld [vmem:[#allocation2 + $0x130] sm:$0x3]
      %v337 = vld [vmem:[#allocation2 + $0x138] sm:$0xff]
      %v338 = vld [vmem:[#allocation2 + $0x140] sm:$0xff]
      %v339 = vld [vmem:[#allocation2 + $0x148] sm:$0x3]
      %v340 = vld [vmem:[#allocation2 + $0x150] sm:$0xff]
      %v341 = vld [vmem:[#allocation2 + $0x158] sm:$0xff]
      %v342 = vld [vmem:[#allocation2 + $0x160] sm:$0x3]
      %v343 = vld [vmem:[#allocation2 + $0x168] sm:$0xff]
      %v344 = vld [vmem:[#allocation2 + $0x170] sm:$0xff]
      %v345 = vld [vmem:[#allocation2 + $0x178] sm:$0x3]
      %v346 = vld [vmem:[#allocation2 + $0x180] sm:$0xff]
      %v347 = vld [vmem:[#allocation2 + $0x188] sm:$0xff]
      %v348 = vld [vmem:[#allocation2 + $0x190] sm:$0x3]
      %v349 = vld [vmem:[#allocation2 + $0x198] sm:$0xff]
      %v350 = vld [vmem:[#allocation2 + $0x1a0] sm:$0xff]
      %v351 = vld [vmem:[#allocation2 + $0x1a8] sm:$0x3]
      %vm400 = vcmask 1046528
      %v401 = vrot.slane %v298, 1
      %v402 = vrot.slane %v299, 1
      %v403 = vsel %vm400, %v401, %v402
      %v404 = vrot.slane %v300, 1
      %v405 = vsel %vm400, %v402, %v404
      %v406 = vrot.slane %v301, 1
      %v407 = vrot.slane %v302, 1
      %v408 = vsel %vm400, %v406, %v407
      %v409 = vrot.slane %v303, 1
      %v410 = vsel %vm400, %v407, %v409
      %v411 = vrot.slane %v304, 1
      %v412 = vrot.slane %v305, 1
      %v413 = vsel %vm400, %v411, %v412
      %v414 = vrot.slane %v306, 1
      %v415 = vsel %vm400, %v412, %v414
      %v416 = vrot.slane %v307, 1
      %v417 = vrot.slane %v308, 1
      %v418 = vsel %vm400, %v416, %v417
      %v419 = vrot.slane %v309, 1
      %v420 = vsel %vm400, %v417, %v419
      %v421 = vrot.slane %v310, 1
      %v422 = vrot.slane %v311, 1
      %v423 = vsel %vm400, %v421, %v422
      %v424 = vrot.slane %v312, 1
      %v425 = vsel %vm400, %v422, %v424
      %v426 = vrot.slane %v313, 1
      %v427 = vrot.slane %v314, 1
      %v428 = vsel %vm400, %v426, %v427
      %v429 = vrot.slane %v315, 1
      %v430 = vsel %vm400, %v427, %v429
      %v431 = vrot.slane %v316, 1
      %v432 = vrot.slane %v317, 1
      %v433 = vsel %vm400, %v431, %v432
      %v434 = vrot.slane %v318, 1
      %v435 = vsel %vm400, %v432, %v434
      %v436 = vrot.slane %v319, 1
      %v437 = vrot.slane %v320, 1
      %v438 = vsel %vm400, %v436, %v437
      %v439 = vrot.slane %v321, 1
      %v440 = vsel %vm400, %v437, %v439
      %v441 = vrot.slane %v322, 1
      %v442 = vrot.slane %v323, 1
      %v443 = vsel %vm400, %v441, %v442
      %v444 = vrot.slane %v324, 1
      %v445 = vsel %vm400, %v442, %v444
      %v446 = vrot.slane %v325, 1
      %v447 = vrot.slane %v326, 1
      %v448 = vsel %vm400, %v446, %v447
      %v449 = vrot.slane %v327, 1
      %v450 = vsel %vm400, %v447, %v449
      %v451 = vrot.slane %v328, 1
      %v452 = vrot.slane %v329, 1
      %v453 = vsel %vm400, %v451, %v452
      %v454 = vrot.slane %v330, 1
      %v455 = vsel %vm400, %v452, %v454
      %v456 = vrot.slane %v331, 1
      %v457 = vrot.slane %v332, 1
      %v458 = vsel %vm400, %v456, %v457
      %v459 = vrot.slane %v333, 1
      %v460 = vsel %vm400, %v457, %v459
      %v461 = vrot.slane %v334, 1
      %v462 = vrot.slane %v335, 1
      %v463 = vsel %vm400, %v461, %v462
      %v464 = vrot.slane %v336, 1
      %v465 = vsel %vm400, %v462, %v464
      %v466 = vrot.slane %v337, 1
      %v467 = vrot.slane %v338, 1
      %v468 = vsel %vm400, %v466, %v467
      %v469 = vrot.slane %v339, 1
      %v470 = vsel %vm400, %v467, %v469
      %v471 = vrot.slane %v340, 1
      %v472 = vrot.slane %v341, 1
      %v473 = vsel %vm400, %v471, %v472
      %v474 = vrot.slane %v342, 1
      %v475 = vsel %vm400, %v472, %v474
      %v476 = vrot.slane %v343, 1
      %v477 = vrot.slane %v344, 1
      %v478 = vsel %vm400, %v476, %v477
      %v479 = vrot.slane %v345, 1
      %v480 = vsel %vm400, %v477, %v479
      %vm481 = vcmask 1045504
      %v482 = vrot.slane %v298, 2
      %v483 = vrot.slane %v299, 2
      %v484 = vsel %vm481, %v482, %v483
      %v485 = vrot.slane %v300, 2
      %v486 = vsel %vm481, %v483, %v485
      %v487 = vrot.slane %v301, 2
      %v488 = vrot.slane %v302, 2
      %v489 = vsel %vm481, %v487, %v488
      %v490 = vrot.slane %v303, 2
      %v491 = vsel %vm481, %v488, %v490
      %v492 = vrot.slane %v304, 2
      %v493 = vrot.slane %v305, 2
      %v494 = vsel %vm481, %v492, %v493
      %v495 = vrot.slane %v306, 2
      %v496 = vsel %vm481, %v493, %v495
      %v497 = vrot.slane %v307, 2
      %v498 = vrot.slane %v308, 2
      %v499 = vsel %vm481, %v497, %v498
      %v500 = vrot.slane %v309, 2
      %v501 = vsel %vm481, %v498, %v500
      %v502 = vrot.slane %v310, 2
      %v503 = vrot.slane %v311, 2
      %v504 = vsel %vm481, %v502, %v503
      %v505 = vrot.slane %v312, 2
      %v506 = vsel %vm481, %v503, %v505
      %v507 = vrot.slane %v313, 2
      %v508 = vrot.slane %v314, 2
      %v509 = vsel %vm481, %v507, %v508
      %v510 = vrot.slane %v315, 2
      %v511 = vsel %vm481, %v508, %v510
      %v512 = vrot.slane %v316, 2
      %v513 = vrot.slane %v317, 2
      %v514 = vsel %vm481, %v512, %v513
      %v515 = vrot.slane %v318, 2
      %v516 = vsel %vm481, %v513, %v515
      %v517 = vrot.slane %v319, 2
      %v518 = vrot.slane %v320, 2
      %v519 = vsel %vm481, %v517, %v518
      %v520 = vrot.slane %v321, 2
      %v521 = vsel %vm481, %v518, %v520
      %v522 = vrot.slane %v322, 2
      %v523 = vrot.slane %v323, 2
      %v524 = vsel %vm481, %v522, %v523
      %v525 = vrot.slane %v324, 2
      %v526 = vsel %vm481, %v523, %v525
      %v527 = vrot.slane %v325, 2
      %v528 = vrot.slane %v326, 2
      %v529 = vsel %vm481, %v527, %v528
      %v530 = vrot.slane %v327, 2
      %v531 = vsel %vm481, %v528, %v530
      %v532 = vrot.slane %v328, 2
      %v533 = vrot.slane %v329, 2
      %v534 = vsel %vm481, %v532, %v533
      %v535 = vrot.slane %v330, 2
      %v536 = vsel %vm481, %v533, %v535
      %v537 = vrot.slane %v331, 2
      %v538 = vrot.slane %v332, 2
      %v539 = vsel %vm481, %v537, %v538
      %v540 = vrot.slane %v333, 2
      %v541 = vsel %vm481, %v538, %v540
      %v542 = vrot.slane %v334, 2
      %v543 = vrot.slane %v335, 2
      %v544 = vsel %vm481, %v542, %v543
      %v545 = vrot.slane %v336, 2
      %v546 = vsel %vm481, %v543, %v545
      %v547 = vrot.slane %v337, 2
      %v548 = vrot.slane %v338, 2
      %v549 = vsel %vm481, %v547, %v548
      %v550 = vrot.slane %v339, 2
      %v551 = vsel %vm481, %v548, %v550
      %v552 = vrot.slane %v340, 2
      %v553 = vrot.slane %v341, 2
      %v554 = vsel %vm481, %v552, %v553
      %v555 = vrot.slane %v342, 2
      %v556 = vsel %vm481, %v553, %v555
      %v557 = vrot.slane %v343, 2
      %v558 = vrot.slane %v344, 2
      %v559 = vsel %vm481, %v557, %v558
      %v560 = vrot.slane %v345, 2
      %v561 = vsel %vm481, %v558, %v560
      %v565 = vrot.slane %v346, 1
      %v566 = vrot.slane %v347, 1
      %v567 = vsel %vm400, %v565, %v566
      %v568 = vrot.slane %v348, 1
      %v569 = vsel %vm400, %v566, %v568
      %v570 = vrot.slane %v346, 2
      %v571 = vrot.slane %v347, 2
      %v572 = vsel %vm481, %v570, %v571
      %v573 = vrot.slane %v348, 2
      %v574 = vsel %vm481, %v571, %v573
      %v578 = vrot.slane %v349, 1
      %v579 = vrot.slane %v350, 1
      %v580 = vsel %vm400, %v578, %v579
      %v581 = vrot.slane %v351, 1
      %v582 = vsel %vm400, %v579, %v581
      %v583 = vrot.slane %v349, 2
      %v584 = vrot.slane %v350, 2
      %v585 = vsel %vm481, %v583, %v584
      %v586 = vrot.slane %v351, 2
      %v587 = vsel %vm481, %v584, %v586
      %588 = vrot.lane.b32.xlu0 %v403, 4
      %v589 = vpop.permute.xlu0 %588
      %590 = vrot.lane.b32.xlu0 %v405, 4
      %v591 = vpop.permute.xlu0 %590
      %592 = vrot.lane.b32.xlu0 %v408, 4
      %v593 = vpop.permute.xlu0 %592
      %594 = vrot.lane.b32.xlu0 %v410, 4
      %v595 = vpop.permute.xlu0 %594
      %596 = vrot.lane.b32.xlu0 %v413, 4
      %v597 = vpop.permute.xlu0 %596
      %598 = vrot.lane.b32.xlu0 %v415, 4
      %v599 = vpop.permute.xlu0 %598
      %600 = vrot.lane.b32.xlu0 %v418, 4
      %v601 = vpop.permute.xlu0 %600
      %602 = vrot.lane.b32.xlu0 %v420, 4
      %v603 = vpop.permute.xlu0 %602
      %604 = vrot.lane.b32.xlu0 %v423, 4
      %v605 = vpop.permute.xlu0 %604
      %606 = vrot.lane.b32.xlu0 %v425, 4
      %v607 = vpop.permute.xlu0 %606
      %608 = vrot.lane.b32.xlu0 %v428, 4
      %v609 = vpop.permute.xlu0 %608
      %610 = vrot.lane.b32.xlu0 %v430, 4
      %v611 = vpop.permute.xlu0 %610
      %612 = vrot.lane.b32.xlu0 %v433, 4
      %v613 = vpop.permute.xlu0 %612
      %614 = vrot.lane.b32.xlu0 %v435, 4
      %v615 = vpop.permute.xlu0 %614
      %616 = vrot.lane.b32.xlu0 %v438, 4
      %v617 = vpop.permute.xlu0 %616
      %618 = vrot.lane.b32.xlu0 %v440, 4
      %v619 = vpop.permute.xlu0 %618
      %620 = vrot.lane.b32.xlu0 %v443, 4
      %v621 = vpop.permute.xlu0 %620
      %622 = vrot.lane.b32.xlu0 %v445, 4
      %v623 = vpop.permute.xlu0 %622
      %624 = vrot.lane.b32.xlu0 %v448, 4
      %v625 = vpop.permute.xlu0 %624
      %626 = vrot.lane.b32.xlu0 %v450, 4
      %v627 = vpop.permute.xlu0 %626
      %628 = vrot.lane.b32.xlu0 %v453, 4
      %v629 = vpop.permute.xlu0 %628
      %630 = vrot.lane.b32.xlu0 %v455, 4
      %v631 = vpop.permute.xlu0 %630
      %632 = vrot.lane.b32.xlu0 %v458, 4
      %v633 = vpop.permute.xlu0 %632
      %634 = vrot.lane.b32.xlu0 %v460, 4
      %v635 = vpop.permute.xlu0 %634
      %636 = vrot.lane.b32.xlu0 %v463, 4
      %v637 = vpop.permute.xlu0 %636
      %638 = vrot.lane.b32.xlu0 %v465, 4
      %v639 = vpop.permute.xlu0 %638
      %640 = vrot.lane.b32.xlu0 %v468, 4
      %v641 = vpop.permute.xlu0 %640
      %642 = vrot.lane.b32.xlu0 %v470, 4
      %v643 = vpop.permute.xlu0 %642
      %644 = vrot.lane.b32.xlu0 %v473, 4
      %v645 = vpop.permute.xlu0 %644
      %646 = vrot.lane.b32.xlu0 %v475, 4
      %v647 = vpop.permute.xlu0 %646
      %648 = vrot.lane.b32.xlu0 %v478, 4
      %v649 = vpop.permute.xlu0 %648
      %650 = vrot.lane.b32.xlu0 %v480, 4
      %v651 = vpop.permute.xlu0 %650
      %684 = vrot.lane.b32.xlu0 %v484, 8
      %v685 = vpop.permute.xlu0 %684
      %686 = vrot.lane.b32.xlu0 %v486, 8
      %v687 = vpop.permute.xlu0 %686
      %688 = vrot.lane.b32.xlu0 %v489, 8
      %v689 = vpop.permute.xlu0 %688
      %690 = vrot.lane.b32.xlu0 %v491, 8
      %v691 = vpop.permute.xlu0 %690
      %692 = vrot.lane.b32.xlu0 %v494, 8
      %v693 = vpop.permute.xlu0 %692
      %694 = vrot.lane.b32.xlu0 %v496, 8
      %v695 = vpop.permute.xlu0 %694
      %696 = vrot.lane.b32.xlu0 %v499, 8
      %v697 = vpop.permute.xlu0 %696
      %698 = vrot.lane.b32.xlu0 %v501, 8
      %v699 = vpop.permute.xlu0 %698
      %700 = vrot.lane.b32.xlu0 %v504, 8
      %v701 = vpop.permute.xlu0 %700
      %702 = vrot.lane.b32.xlu0 %v506, 8
      %v703 = vpop.permute.xlu0 %702
      %704 = vrot.lane.b32.xlu0 %v509, 8
      %v705 = vpop.permute.xlu0 %704
      %706 = vrot.lane.b32.xlu0 %v511, 8
      %v707 = vpop.permute.xlu0 %706
      %708 = vrot.lane.b32.xlu0 %v514, 8
      %v709 = vpop.permute.xlu0 %708
      %710 = vrot.lane.b32.xlu0 %v516, 8
      %v711 = vpop.permute.xlu0 %710
      %712 = vrot.lane.b32.xlu0 %v519, 8
      %v713 = vpop.permute.xlu0 %712
      %714 = vrot.lane.b32.xlu0 %v521, 8
      %v715 = vpop.permute.xlu0 %714
      %716 = vrot.lane.b32.xlu0 %v524, 8
      %v717 = vpop.permute.xlu0 %716
      %718 = vrot.lane.b32.xlu0 %v526, 8
      %v719 = vpop.permute.xlu0 %718
      %720 = vrot.lane.b32.xlu0 %v529, 8
      %v721 = vpop.permute.xlu0 %720
      %722 = vrot.lane.b32.xlu0 %v531, 8
      %v723 = vpop.permute.xlu0 %722
      %724 = vrot.lane.b32.xlu0 %v534, 8
      %v725 = vpop.permute.xlu0 %724
      %726 = vrot.lane.b32.xlu0 %v536, 8
      %v727 = vpop.permute.xlu0 %726
      %728 = vrot.lane.b32.xlu0 %v539, 8
      %v729 = vpop.permute.xlu0 %728
      %730 = vrot.lane.b32.xlu0 %v541, 8
      %v731 = vpop.permute.xlu0 %730
      %732 = vrot.lane.b32.xlu0 %v544, 8
      %v733 = vpop.permute.xlu0 %732
      %734 = vrot.lane.b32.xlu0 %v546, 8
      %v735 = vpop.permute.xlu0 %734
      %736 = vrot.lane.b32.xlu0 %v549, 8
      %v737 = vpop.permute.xlu0 %736
      %738 = vrot.lane.b32.xlu0 %v551, 8
      %v739 = vpop.permute.xlu0 %738
      %740 = vrot.lane.b32.xlu0 %v554, 8
      %v741 = vpop.permute.xlu0 %740
      %742 = vrot.lane.b32.xlu0 %v556, 8
      %v743 = vpop.permute.xlu0 %742
      %744 = vrot.lane.b32.xlu0 %v559, 8
      %v745 = vpop.permute.xlu0 %744
      %746 = vrot.lane.b32.xlu0 %v561, 8
      %v747 = vpop.permute.xlu0 %746
      %780 = vrot.lane.b32.xlu0 %v301, 12
      %v781 = vpop.permute.xlu0 %780
      %782 = vrot.lane.b32.xlu0 %v302, 12
      %v783 = vpop.permute.xlu0 %782
      %784 = vrot.lane.b32.xlu0 %v304, 12
      %v785 = vpop.permute.xlu0 %784
      %786 = vrot.lane.b32.xlu0 %v305, 12
      %v787 = vpop.permute.xlu0 %786
      %788 = vrot.lane.b32.xlu0 %v307, 12
      %v789 = vpop.permute.xlu0 %788
      %790 = vrot.lane.b32.xlu0 %v308, 12
      %v791 = vpop.permute.xlu0 %790
      %792 = vrot.lane.b32.xlu0 %v310, 12
      %v793 = vpop.permute.xlu0 %792
      %794 = vrot.lane.b32.xlu0 %v311, 12
      %v795 = vpop.permute.xlu0 %794
      %796 = vrot.lane.b32.xlu0 %v313, 12
      %v797 = vpop.permute.xlu0 %796
      %798 = vrot.lane.b32.xlu0 %v314, 12
      %v799 = vpop.permute.xlu0 %798
      %800 = vrot.lane.b32.xlu0 %v316, 12
      %v801 = vpop.permute.xlu0 %800
      %802 = vrot.lane.b32.xlu0 %v317, 12
      %v803 = vpop.permute.xlu0 %802
      %804 = vrot.lane.b32.xlu0 %v319, 12
      %v805 = vpop.permute.xlu0 %804
      %806 = vrot.lane.b32.xlu0 %v320, 12
      %v807 = vpop.permute.xlu0 %806
      %808 = vrot.lane.b32.xlu0 %v322, 12
      %v809 = vpop.permute.xlu0 %808
      %810 = vrot.lane.b32.xlu0 %v323, 12
      %v811 = vpop.permute.xlu0 %810
      %812 = vrot.lane.b32.xlu0 %v325, 12
      %v813 = vpop.permute.xlu0 %812
      %814 = vrot.lane.b32.xlu0 %v326, 12
      %v815 = vpop.permute.xlu0 %814
      %816 = vrot.lane.b32.xlu0 %v328, 12
      %v817 = vpop.permute.xlu0 %816
      %818 = vrot.lane.b32.xlu0 %v329, 12
      %v819 = vpop.permute.xlu0 %818
      %820 = vrot.lane.b32.xlu0 %v331, 12
      %v821 = vpop.permute.xlu0 %820
      %822 = vrot.lane.b32.xlu0 %v332, 12
      %v823 = vpop.permute.xlu0 %822
      %824 = vrot.lane.b32.xlu0 %v334, 12
      %v825 = vpop.permute.xlu0 %824
      %826 = vrot.lane.b32.xlu0 %v335, 12
      %v827 = vpop.permute.xlu0 %826
      %828 = vrot.lane.b32.xlu0 %v337, 12
      %v829 = vpop.permute.xlu0 %828
      %830 = vrot.lane.b32.xlu0 %v338, 12
      %v831 = vpop.permute.xlu0 %830
      %832 = vrot.lane.b32.xlu0 %v340, 12
      %v833 = vpop.permute.xlu0 %832
      %834 = vrot.lane.b32.xlu0 %v341, 12
      %v835 = vpop.permute.xlu0 %834
      %836 = vrot.lane.b32.xlu0 %v343, 12
      %v837 = vpop.permute.xlu0 %836
      %838 = vrot.lane.b32.xlu0 %v344, 12
      %v839 = vpop.permute.xlu0 %838
      %840 = vrot.lane.b32.xlu0 %v346, 12
      %v841 = vpop.permute.xlu0 %840
      %842 = vrot.lane.b32.xlu0 %v347, 12
      %v843 = vpop.permute.xlu0 %842
      %876 = vrot.lane.b32.xlu0 %v408, 16
      %v877 = vpop.permute.xlu0 %876
      %878 = vrot.lane.b32.xlu0 %v410, 16
      %v879 = vpop.permute.xlu0 %878
      %880 = vrot.lane.b32.xlu0 %v413, 16
      %v881 = vpop.permute.xlu0 %880
      %882 = vrot.lane.b32.xlu0 %v415, 16
      %v883 = vpop.permute.xlu0 %882
      %884 = vrot.lane.b32.xlu0 %v418, 16
      %v885 = vpop.permute.xlu0 %884
      %886 = vrot.lane.b32.xlu0 %v420, 16
      %v887 = vpop.permute.xlu0 %886
      %888 = vrot.lane.b32.xlu0 %v423, 16
      %v889 = vpop.permute.xlu0 %888
      %890 = vrot.lane.b32.xlu0 %v425, 16
      %v891 = vpop.permute.xlu0 %890
      %892 = vrot.lane.b32.xlu0 %v428, 16
      %v893 = vpop.permute.xlu0 %892
      %894 = vrot.lane.b32.xlu0 %v430, 16
      %v895 = vpop.permute.xlu0 %894
      %896 = vrot.lane.b32.xlu0 %v433, 16
      %v897 = vpop.permute.xlu0 %896
      %898 = vrot.lane.b32.xlu0 %v435, 16
      %v899 = vpop.permute.xlu0 %898
      %900 = vrot.lane.b32.xlu0 %v438, 16
      %v901 = vpop.permute.xlu0 %900
      %902 = vrot.lane.b32.xlu0 %v440, 16
      %v903 = vpop.permute.xlu0 %902
      %904 = vrot.lane.b32.xlu0 %v443, 16
      %v905 = vpop.permute.xlu0 %904
      %906 = vrot.lane.b32.xlu0 %v445, 16
      %v907 = vpop.permute.xlu0 %906
      %908 = vrot.lane.b32.xlu0 %v448, 16
      %v909 = vpop.permute.xlu0 %908
      %910 = vrot.lane.b32.xlu0 %v450, 16
      %v911 = vpop.permute.xlu0 %910
      %912 = vrot.lane.b32.xlu0 %v453, 16
      %v913 = vpop.permute.xlu0 %912
      %914 = vrot.lane.b32.xlu0 %v455, 16
      %v915 = vpop.permute.xlu0 %914
      %916 = vrot.lane.b32.xlu0 %v458, 16
      %v917 = vpop.permute.xlu0 %916
      %918 = vrot.lane.b32.xlu0 %v460, 16
      %v919 = vpop.permute.xlu0 %918
      %920 = vrot.lane.b32.xlu0 %v463, 16
      %v921 = vpop.permute.xlu0 %920
      %922 = vrot.lane.b32.xlu0 %v465, 16
      %v923 = vpop.permute.xlu0 %922
      %924 = vrot.lane.b32.xlu0 %v468, 16
      %v925 = vpop.permute.xlu0 %924
      %926 = vrot.lane.b32.xlu0 %v470, 16
      %v927 = vpop.permute.xlu0 %926
      %928 = vrot.lane.b32.xlu0 %v473, 16
      %v929 = vpop.permute.xlu0 %928
      %930 = vrot.lane.b32.xlu0 %v475, 16
      %v931 = vpop.permute.xlu0 %930
      %932 = vrot.lane.b32.xlu0 %v478, 16
      %v933 = vpop.permute.xlu0 %932
      %934 = vrot.lane.b32.xlu0 %v480, 16
      %v935 = vpop.permute.xlu0 %934
      %936 = vrot.lane.b32.xlu0 %v567, 16
      %v937 = vpop.permute.xlu0 %936
      %938 = vrot.lane.b32.xlu0 %v569, 16
      %v939 = vpop.permute.xlu0 %938
      %972 = vrot.lane.b32.xlu0 %v489, 20
      %v973 = vpop.permute.xlu0 %972
      %974 = vrot.lane.b32.xlu0 %v491, 20
      %v975 = vpop.permute.xlu0 %974
      %976 = vrot.lane.b32.xlu0 %v494, 20
      %v977 = vpop.permute.xlu0 %976
      %978 = vrot.lane.b32.xlu0 %v496, 20
      %v979 = vpop.permute.xlu0 %978
      %980 = vrot.lane.b32.xlu0 %v499, 20
      %v981 = vpop.permute.xlu0 %980
      %982 = vrot.lane.b32.xlu0 %v501, 20
      %v983 = vpop.permute.xlu0 %982
      %984 = vrot.lane.b32.xlu0 %v504, 20
      %v985 = vpop.permute.xlu0 %984
      %986 = vrot.lane.b32.xlu0 %v506, 20
      %v987 = vpop.permute.xlu0 %986
      %988 = vrot.lane.b32.xlu0 %v509, 20
      %v989 = vpop.permute.xlu0 %988
      %990 = vrot.lane.b32.xlu0 %v511, 20
      %v991 = vpop.permute.xlu0 %990
      %992 = vrot.lane.b32.xlu0 %v514, 20
      %v993 = vpop.permute.xlu0 %992
      %994 = vrot.lane.b32.xlu0 %v516, 20
      %v995 = vpop.permute.xlu0 %994
      %996 = vrot.lane.b32.xlu0 %v519, 20
      %v997 = vpop.permute.xlu0 %996
      %998 = vrot.lane.b32.xlu0 %v521, 20
      %v999 = vpop.permute.xlu0 %998
      %1000 = vrot.lane.b32.xlu0 %v524, 20
      %v1001 = vpop.permute.xlu0 %1000
      %1002 = vrot.lane.b32.xlu0 %v526, 20
      %v1003 = vpop.permute.xlu0 %1002
      %1004 = vrot.lane.b32.xlu0 %v529, 20
      %v1005 = vpop.permute.xlu0 %1004
      %1006 = vrot.lane.b32.xlu0 %v531, 20
      %v1007 = vpop.permute.xlu0 %1006
      %1008 = vrot.lane.b32.xlu0 %v534, 20
      %v1009 = vpop.permute.xlu0 %1008
      %1010 = vrot.lane.b32.xlu0 %v536, 20
      %v1011 = vpop.permute.xlu0 %1010
      %1012 = vrot.lane.b32.xlu0 %v539, 20
      %v1013 = vpop.permute.xlu0 %1012
      %1014 = vrot.lane.b32.xlu0 %v541, 20
      %v1015 = vpop.permute.xlu0 %1014
      %1016 = vrot.lane.b32.xlu0 %v544, 20
      %v1017 = vpop.permute.xlu0 %1016
      %1018 = vrot.lane.b32.xlu0 %v546, 20
      %v1019 = vpop.permute.xlu0 %1018
      %1020 = vrot.lane.b32.xlu0 %v549, 20
      %v1021 = vpop.permute.xlu0 %1020
      %1022 = vrot.lane.b32.xlu0 %v551, 20
      %v1023 = vpop.permute.xlu0 %1022
      %1024 = vrot.lane.b32.xlu0 %v554, 20
      %v1025 = vpop.permute.xlu0 %1024
      %1026 = vrot.lane.b32.xlu0 %v556, 20
      %v1027 = vpop.permute.xlu0 %1026
      %1028 = vrot.lane.b32.xlu0 %v559, 20
      %v1029 = vpop.permute.xlu0 %1028
      %1030 = vrot.lane.b32.xlu0 %v561, 20
      %v1031 = vpop.permute.xlu0 %1030
      %1032 = vrot.lane.b32.xlu0 %v572, 20
      %v1033 = vpop.permute.xlu0 %1032
      %1034 = vrot.lane.b32.xlu0 %v574, 20
      %v1035 = vpop.permute.xlu0 %1034
      %1068 = vrot.lane.b32.xlu0 %v304, 24
      %v1069 = vpop.permute.xlu0 %1068
      %1070 = vrot.lane.b32.xlu0 %v305, 24
      %v1071 = vpop.permute.xlu0 %1070
      %1072 = vrot.lane.b32.xlu0 %v307, 24
      %v1073 = vpop.permute.xlu0 %1072
      %1074 = vrot.lane.b32.xlu0 %v308, 24
      %v1075 = vpop.permute.xlu0 %1074
      %1076 = vrot.lane.b32.xlu0 %v310, 24
      %v1077 = vpop.permute.xlu0 %1076
      %1078 = vrot.lane.b32.xlu0 %v311, 24
      %v1079 = vpop.permute.xlu0 %1078
      %1080 = vrot.lane.b32.xlu0 %v313, 24
      %v1081 = vpop.permute.xlu0 %1080
      %1082 = vrot.lane.b32.xlu0 %v314, 24
      %v1083 = vpop.permute.xlu0 %1082
      %1084 = vrot.lane.b32.xlu0 %v316, 24
      %v1085 = vpop.permute.xlu0 %1084
      %1086 = vrot.lane.b32.xlu0 %v317, 24
      %v1087 = vpop.permute.xlu0 %1086
      %1088 = vrot.lane.b32.xlu0 %v319, 24
      %v1089 = vpop.permute.xlu0 %1088
      %1090 = vrot.lane.b32.xlu0 %v320, 24
      %v1091 = vpop.permute.xlu0 %1090
      %1092 = vrot.lane.b32.xlu0 %v322, 24
      %v1093 = vpop.permute.xlu0 %1092
      %1094 = vrot.lane.b32.xlu0 %v323, 24
      %v1095 = vpop.permute.xlu0 %1094
      %1096 = vrot.lane.b32.xlu0 %v325, 24
      %v1097 = vpop.permute.xlu0 %1096
      %1098 = vrot.lane.b32.xlu0 %v326, 24
      %v1099 = vpop.permute.xlu0 %1098
      %1100 = vrot.lane.b32.xlu0 %v328, 24
      %v1101 = vpop.permute.xlu0 %1100
      %1102 = vrot.lane.b32.xlu0 %v329, 24
      %v1103 = vpop.permute.xlu0 %1102
      %1104 = vrot.lane.b32.xlu0 %v331, 24
      %v1105 = vpop.permute.xlu0 %1104
      %1106 = vrot.lane.b32.xlu0 %v332, 24
      %v1107 = vpop.permute.xlu0 %1106
      %1108 = vrot.lane.b32.xlu0 %v334, 24
      %v1109 = vpop.permute.xlu0 %1108
      %1110 = vrot.lane.b32.xlu0 %v335, 24
      %v1111 = vpop.permute.xlu0 %1110
      %1112 = vrot.lane.b32.xlu0 %v337, 24
      %v1113 = vpop.permute.xlu0 %1112
      %1114 = vrot.lane.b32.xlu0 %v338, 24
      %v1115 = vpop.permute.xlu0 %1114
      %1116 = vrot.lane.b32.xlu0 %v340, 24
      %v1117 = vpop.permute.xlu0 %1116
      %1118 = vrot.lane.b32.xlu0 %v341, 24
      %v1119 = vpop.permute.xlu0 %1118
      %1120 = vrot.lane.b32.xlu0 %v343, 24
      %v1121 = vpop.permute.xlu0 %1120
      %1122 = vrot.lane.b32.xlu0 %v344, 24
      %v1123 = vpop.permute.xlu0 %1122
      %1124 = vrot.lane.b32.xlu0 %v346, 24
      %v1125 = vpop.permute.xlu0 %1124
      %1126 = vrot.lane.b32.xlu0 %v347, 24
      %v1127 = vpop.permute.xlu0 %1126
      %1128 = vrot.lane.b32.xlu0 %v349, 24
      %v1129 = vpop.permute.xlu0 %1128
      %1130 = vrot.lane.b32.xlu0 %v350, 24
      %v1131 = vpop.permute.xlu0 %1130
      %1164 = vrot.lane.b32.xlu0 %v413, 28
      %v1165 = vpop.permute.xlu0 %1164
      %1166 = vrot.lane.b32.xlu0 %v415, 28
      %v1167 = vpop.permute.xlu0 %1166
      %1168 = vrot.lane.b32.xlu0 %v418, 28
      %v1169 = vpop.permute.xlu0 %1168
      %1170 = vrot.lane.b32.xlu0 %v420, 28
      %v1171 = vpop.permute.xlu0 %1170
      %1172 = vrot.lane.b32.xlu0 %v423, 28
      %v1173 = vpop.permute.xlu0 %1172
      %1174 = vrot.lane.b32.xlu0 %v425, 28
      %v1175 = vpop.permute.xlu0 %1174
      %1176 = vrot.lane.b32.xlu0 %v428, 28
      %v1177 = vpop.permute.xlu0 %1176
      %1178 = vrot.lane.b32.xlu0 %v430, 28
      %v1179 = vpop.permute.xlu0 %1178
      %1180 = vrot.lane.b32.xlu0 %v433, 28
      %v1181 = vpop.permute.xlu0 %1180
      %1182 = vrot.lane.b32.xlu0 %v435, 28
      %v1183 = vpop.permute.xlu0 %1182
      %1184 = vrot.lane.b32.xlu0 %v438, 28
      %v1185 = vpop.permute.xlu0 %1184
      %1186 = vrot.lane.b32.xlu0 %v440, 28
      %v1187 = vpop.permute.xlu0 %1186
      %1188 = vrot.lane.b32.xlu0 %v443, 28
      %v1189 = vpop.permute.xlu0 %1188
      %1190 = vrot.lane.b32.xlu0 %v445, 28
      %v1191 = vpop.permute.xlu0 %1190
      %1192 = vrot.lane.b32.xlu0 %v448, 28
      %v1193 = vpop.permute.xlu0 %1192
      %1194 = vrot.lane.b32.xlu0 %v450, 28
      %v1195 = vpop.permute.xlu0 %1194
      %1196 = vrot.lane.b32.xlu0 %v453, 28
      %v1197 = vpop.permute.xlu0 %1196
      %1198 = vrot.lane.b32.xlu0 %v455, 28
      %v1199 = vpop.permute.xlu0 %1198
      %1200 = vrot.lane.b32.xlu0 %v458, 28
      %v1201 = vpop.permute.xlu0 %1200
      %1202 = vrot.lane.b32.xlu0 %v460, 28
      %v1203 = vpop.permute.xlu0 %1202
      %1204 = vrot.lane.b32.xlu0 %v463, 28
      %v1205 = vpop.permute.xlu0 %1204
      %1206 = vrot.lane.b32.xlu0 %v465, 28
      %v1207 = vpop.permute.xlu0 %1206
      %1208 = vrot.lane.b32.xlu0 %v468, 28
      %v1209 = vpop.permute.xlu0 %1208
      %1210 = vrot.lane.b32.xlu0 %v470, 28
      %v1211 = vpop.permute.xlu0 %1210
      %1212 = vrot.lane.b32.xlu0 %v473, 28
      %v1213 = vpop.permute.xlu0 %1212
      %1214 = vrot.lane.b32.xlu0 %v475, 28
      %v1215 = vpop.permute.xlu0 %1214
      %1216 = vrot.lane.b32.xlu0 %v478, 28
      %v1217 = vpop.permute.xlu0 %1216
      %1218 = vrot.lane.b32.xlu0 %v480, 28
      %v1219 = vpop.permute.xlu0 %1218
      %1220 = vrot.lane.b32.xlu0 %v567, 28
      %v1221 = vpop.permute.xlu0 %1220
      %1222 = vrot.lane.b32.xlu0 %v569, 28
      %v1223 = vpop.permute.xlu0 %1222
      %1224 = vrot.lane.b32.xlu0 %v580, 28
      %v1225 = vpop.permute.xlu0 %1224
      %1226 = vrot.lane.b32.xlu0 %v582, 28
      %v1227 = vpop.permute.xlu0 %1226
      %1260 = vrot.lane.b32.xlu0 %v494, 32
      %v1261 = vpop.permute.xlu0 %1260
      %1262 = vrot.lane.b32.xlu0 %v496, 32
      %v1263 = vpop.permute.xlu0 %1262
      %1264 = vrot.lane.b32.xlu0 %v499, 32
      %v1265 = vpop.permute.xlu0 %1264
      %1266 = vrot.lane.b32.xlu0 %v501, 32
      %v1267 = vpop.permute.xlu0 %1266
      %1268 = vrot.lane.b32.xlu0 %v504, 32
      %v1269 = vpop.permute.xlu0 %1268
      %1270 = vrot.lane.b32.xlu0 %v506, 32
      %v1271 = vpop.permute.xlu0 %1270
      %1272 = vrot.lane.b32.xlu0 %v509, 32
      %v1273 = vpop.permute.xlu0 %1272
      %1274 = vrot.lane.b32.xlu0 %v511, 32
      %v1275 = vpop.permute.xlu0 %1274
      %1276 = vrot.lane.b32.xlu0 %v514, 32
      %v1277 = vpop.permute.xlu0 %1276
      %1278 = vrot.lane.b32.xlu0 %v516, 32
      %v1279 = vpop.permute.xlu0 %1278
      %1280 = vrot.lane.b32.xlu0 %v519, 32
      %v1281 = vpop.permute.xlu0 %1280
      %1282 = vrot.lane.b32.xlu0 %v521, 32
      %v1283 = vpop.permute.xlu0 %1282
      %1284 = vrot.lane.b32.xlu0 %v524, 32
      %v1285 = vpop.permute.xlu0 %1284
      %1286 = vrot.lane.b32.xlu0 %v526, 32
      %v1287 = vpop.permute.xlu0 %1286
      %1288 = vrot.lane.b32.xlu0 %v529, 32
      %v1289 = vpop.permute.xlu0 %1288
      %1290 = vrot.lane.b32.xlu0 %v531, 32
      %v1291 = vpop.permute.xlu0 %1290
      %1292 = vrot.lane.b32.xlu0 %v534, 32
      %v1293 = vpop.permute.xlu0 %1292
      %1294 = vrot.lane.b32.xlu0 %v536, 32
      %v1295 = vpop.permute.xlu0 %1294
      %1296 = vrot.lane.b32.xlu0 %v539, 32
      %v1297 = vpop.permute.xlu0 %1296
      %1298 = vrot.lane.b32.xlu0 %v541, 32
      %v1299 = vpop.permute.xlu0 %1298
      %1300 = vrot.lane.b32.xlu0 %v544, 32
      %v1301 = vpop.permute.xlu0 %1300
      %1302 = vrot.lane.b32.xlu0 %v546, 32
      %v1303 = vpop.permute.xlu0 %1302
      %1304 = vrot.lane.b32.xlu0 %v549, 32
      %v1305 = vpop.permute.xlu0 %1304
      %1306 = vrot.lane.b32.xlu0 %v551, 32
      %v1307 = vpop.permute.xlu0 %1306
      %1308 = vrot.lane.b32.xlu0 %v554, 32
      %v1309 = vpop.permute.xlu0 %1308
      %1310 = vrot.lane.b32.xlu0 %v556, 32
      %v1311 = vpop.permute.xlu0 %1310
      %1312 = vrot.lane.b32.xlu0 %v559, 32
      %v1313 = vpop.permute.xlu0 %1312
      %1314 = vrot.lane.b32.xlu0 %v561, 32
      %v1315 = vpop.permute.xlu0 %1314
      %1316 = vrot.lane.b32.xlu0 %v572, 32
      %v1317 = vpop.permute.xlu0 %1316
      %1318 = vrot.lane.b32.xlu0 %v574, 32
      %v1319 = vpop.permute.xlu0 %1318
      %1320 = vrot.lane.b32.xlu0 %v585, 32
      %v1321 = vpop.permute.xlu0 %1320
      %1322 = vrot.lane.b32.xlu0 %v587, 32
      %v1323 = vpop.permute.xlu0 %1322
      %v1356 = vsel %vm145, %v298, %v589
      %v1357 = vsel %vm145, %v299, %v591
      %v1358 = vsel %vm145, %v301, %v593
      %v1359 = vsel %vm145, %v302, %v595
      %v1360 = vsel %vm145, %v304, %v597
      %v1361 = vsel %vm145, %v305, %v599
      %v1362 = vsel %vm145, %v307, %v601
      %v1363 = vsel %vm145, %v308, %v603
      %v1364 = vsel %vm145, %v310, %v605
      %v1365 = vsel %vm145, %v311, %v607
      %v1366 = vsel %vm145, %v313, %v609
      %v1367 = vsel %vm145, %v314, %v611
      %v1368 = vsel %vm145, %v316, %v613
      %v1369 = vsel %vm145, %v317, %v615
      %v1370 = vsel %vm145, %v319, %v617
      %v1371 = vsel %vm145, %v320, %v619
      %v1372 = vsel %vm145, %v322, %v621
      %v1373 = vsel %vm145, %v323, %v623
      %v1374 = vsel %vm145, %v325, %v625
      %v1375 = vsel %vm145, %v326, %v627
      %v1376 = vsel %vm145, %v328, %v629
      %v1377 = vsel %vm145, %v329, %v631
      %v1378 = vsel %vm145, %v331, %v633
      %v1379 = vsel %vm145, %v332, %v635
      %v1380 = vsel %vm145, %v334, %v637
      %v1381 = vsel %vm145, %v335, %v639
      %v1382 = vsel %vm145, %v337, %v641
      %v1383 = vsel %vm145, %v338, %v643
      %v1384 = vsel %vm145, %v340, %v645
      %v1385 = vsel %vm145, %v341, %v647
      %v1386 = vsel %vm145, %v343, %v649
      %v1387 = vsel %vm145, %v344, %v651
      %vm1388 = vcmask 64512
      %v1389 = vsel %vm1388, %v1356, %v685
      %v1390 = vsel %vm1388, %v1357, %v687
      %v1391 = vsel %vm1388, %v1358, %v689
      %v1392 = vsel %vm1388, %v1359, %v691
      %v1393 = vsel %vm1388, %v1360, %v693
      %v1394 = vsel %vm1388, %v1361, %v695
      %v1395 = vsel %vm1388, %v1362, %v697
      %v1396 = vsel %vm1388, %v1363, %v699
      %v1397 = vsel %vm1388, %v1364, %v701
      %v1398 = vsel %vm1388, %v1365, %v703
      %v1399 = vsel %vm1388, %v1366, %v705
      %v1400 = vsel %vm1388, %v1367, %v707
      %v1401 = vsel %vm1388, %v1368, %v709
      %v1402 = vsel %vm1388, %v1369, %v711
      %v1403 = vsel %vm1388, %v1370, %v713
      %v1404 = vsel %vm1388, %v1371, %v715
      %v1405 = vsel %vm1388, %v1372, %v717
      %v1406 = vsel %vm1388, %v1373, %v719
      %v1407 = vsel %vm1388, %v1374, %v721
      %v1408 = vsel %vm1388, %v1375, %v723
      %v1409 = vsel %vm1388, %v1376, %v725
      %v1410 = vsel %vm1388, %v1377, %v727
      %v1411 = vsel %vm1388, %v1378, %v729
      %v1412 = vsel %vm1388, %v1379, %v731
      %v1413 = vsel %vm1388, %v1380, %v733
      %v1414 = vsel %vm1388, %v1381, %v735
      %v1415 = vsel %vm1388, %v1382, %v737
      %v1416 = vsel %vm1388, %v1383, %v739
      %v1417 = vsel %vm1388, %v1384, %v741
      %v1418 = vsel %vm1388, %v1385, %v743
      %v1419 = vsel %vm1388, %v1386, %v745
      %v1420 = vsel %vm1388, %v1387, %v747
      %vm1421 = vcmask 97280
      %v1422 = vsel %vm1421, %v1389, %v781
      %v1423 = vsel %vm1421, %v1390, %v783
      %v1424 = vsel %vm1421, %v1391, %v785
      %v1425 = vsel %vm1421, %v1392, %v787
      %v1426 = vsel %vm1421, %v1393, %v789
      %v1427 = vsel %vm1421, %v1394, %v791
      %v1428 = vsel %vm1421, %v1395, %v793
      %v1429 = vsel %vm1421, %v1396, %v795
      %v1430 = vsel %vm1421, %v1397, %v797
      %v1431 = vsel %vm1421, %v1398, %v799
      %v1432 = vsel %vm1421, %v1399, %v801
      %v1433 = vsel %vm1421, %v1400, %v803
      %v1434 = vsel %vm1421, %v1401, %v805
      %v1435 = vsel %vm1421, %v1402, %v807
      %v1436 = vsel %vm1421, %v1403, %v809
      %v1437 = vsel %vm1421, %v1404, %v811
      %v1438 = vsel %vm1421, %v1405, %v813
      %v1439 = vsel %vm1421, %v1406, %v815
      %v1440 = vsel %vm1421, %v1407, %v817
      %v1441 = vsel %vm1421, %v1408, %v819
      %v1442 = vsel %vm1421, %v1409, %v821
      %v1443 = vsel %vm1421, %v1410, %v823
      %v1444 = vsel %vm1421, %v1411, %v825
      %v1445 = vsel %vm1421, %v1412, %v827
      %v1446 = vsel %vm1421, %v1413, %v829
      %v1447 = vsel %vm1421, %v1414, %v831
      %v1448 = vsel %vm1421, %v1415, %v833
      %v1449 = vsel %vm1421, %v1416, %v835
      %v1450 = vsel %vm1421, %v1417, %v837
      %v1451 = vsel %vm1421, %v1418, %v839
      %v1452 = vsel %vm1421, %v1419, %v841
      %v1453 = vsel %vm1421, %v1420, %v843
      %vm1454 = vcmask 130048
      %v1455 = vsel %vm1454, %v1422, %v877
      %v1456 = vsel %vm1454, %v1423, %v879
      %v1457 = vsel %vm1454, %v1424, %v881
      %v1458 = vsel %vm1454, %v1425, %v883
      %v1459 = vsel %vm1454, %v1426, %v885
      %v1460 = vsel %vm1454, %v1427, %v887
      %v1461 = vsel %vm1454, %v1428, %v889
      %v1462 = vsel %vm1454, %v1429, %v891
      %v1463 = vsel %vm1454, %v1430, %v893
      %v1464 = vsel %vm1454, %v1431, %v895
      %v1465 = vsel %vm1454, %v1432, %v897
      %v1466 = vsel %vm1454, %v1433, %v899
      %v1467 = vsel %vm1454, %v1434, %v901
      %v1468 = vsel %vm1454, %v1435, %v903
      %v1469 = vsel %vm1454, %v1436, %v905
      %v1470 = vsel %vm1454, %v1437, %v907
      %v1471 = vsel %vm1454, %v1438, %v909
      %v1472 = vsel %vm1454, %v1439, %v911
      %v1473 = vsel %vm1454, %v1440, %v913
      %v1474 = vsel %vm1454, %v1441, %v915
      %v1475 = vsel %vm1454, %v1442, %v917
      %v1476 = vsel %vm1454, %v1443, %v919
      %v1477 = vsel %vm1454, %v1444, %v921
      %v1478 = vsel %vm1454, %v1445, %v923
      %v1479 = vsel %vm1454, %v1446, %v925
      %v1480 = vsel %vm1454, %v1447, %v927
      %v1481 = vsel %vm1454, %v1448, %v929
      %v1482 = vsel %vm1454, %v1449, %v931
      %v1483 = vsel %vm1454, %v1450, %v933
      %v1484 = vsel %vm1454, %v1451, %v935
      %v1485 = vsel %vm1454, %v1452, %v937
      %v1486 = vsel %vm1454, %v1453, %v939
      %vm1487 = vcmask 162816
      %v1488 = vsel %vm1487, %v1455, %v973
      %v1489 = vsel %vm1487, %v1456, %v975
      %v1490 = vsel %vm1487, %v1457, %v977
      %v1491 = vsel %vm1487, %v1458, %v979
      %v1492 = vsel %vm1487, %v1459, %v981
      %v1493 = vsel %vm1487, %v1460, %v983
      %v1494 = vsel %vm1487, %v1461, %v985
      %v1495 = vsel %vm1487, %v1462, %v987
      %v1496 = vsel %vm1487, %v1463, %v989
      %v1497 = vsel %vm1487, %v1464, %v991
      %v1498 = vsel %vm1487, %v1465, %v993
      %v1499 = vsel %vm1487, %v1466, %v995
      %v1500 = vsel %vm1487, %v1467, %v997
      %v1501 = vsel %vm1487, %v1468, %v999
      %v1502 = vsel %vm1487, %v1469, %v1001
      %v1503 = vsel %vm1487, %v1470, %v1003
      %v1504 = vsel %vm1487, %v1471, %v1005
      %v1505 = vsel %vm1487, %v1472, %v1007
      %v1506 = vsel %vm1487, %v1473, %v1009
      %v1507 = vsel %vm1487, %v1474, %v1011
      %v1508 = vsel %vm1487, %v1475, %v1013
      %v1509 = vsel %vm1487, %v1476, %v1015
      %v1510 = vsel %vm1487, %v1477, %v1017
      %v1511 = vsel %vm1487, %v1478, %v1019
      %v1512 = vsel %vm1487, %v1479, %v1021
      %v1513 = vsel %vm1487, %v1480, %v1023
      %v1514 = vsel %vm1487, %v1481, %v1025
      %v1515 = vsel %vm1487, %v1482, %v1027
      %v1516 = vsel %vm1487, %v1483, %v1029
      %v1517 = vsel %vm1487, %v1484, %v1031
      %v1518 = vsel %vm1487, %v1485, %v1033
      %v1519 = vsel %vm1487, %v1486, %v1035
      %vm1520 = vcmask 195584
      %v1521 = vsel %vm1520, %v1488, %v1069
      %v1522 = vsel %vm1520, %v1489, %v1071
      %v1523 = vsel %vm1520, %v1490, %v1073
      %v1524 = vsel %vm1520, %v1491, %v1075
      %v1525 = vsel %vm1520, %v1492, %v1077
      %v1526 = vsel %vm1520, %v1493, %v1079
      %v1527 = vsel %vm1520, %v1494, %v1081
      %v1528 = vsel %vm1520, %v1495, %v1083
      %v1529 = vsel %vm1520, %v1496, %v1085
      %v1530 = vsel %vm1520, %v1497, %v1087
      %v1531 = vsel %vm1520, %v1498, %v1089
      %v1532 = vsel %vm1520, %v1499, %v1091
      %v1533 = vsel %vm1520, %v1500, %v1093
      %v1534 = vsel %vm1520, %v1501, %v1095
      %v1535 = vsel %vm1520, %v1502, %v1097
      %v1536 = vsel %vm1520, %v1503, %v1099
      %v1537 = vsel %vm1520, %v1504, %v1101
      %v1538 = vsel %vm1520, %v1505, %v1103
      %v1539 = vsel %vm1520, %v1506, %v1105
      %v1540 = vsel %vm1520, %v1507, %v1107
      %v1541 = vsel %vm1520, %v1508, %v1109
      %v1542 = vsel %vm1520, %v1509, %v1111
      %v1543 = vsel %vm1520, %v1510, %v1113
      %v1544 = vsel %vm1520, %v1511, %v1115
      %v1545 = vsel %vm1520, %v1512, %v1117
      %v1546 = vsel %vm1520, %v1513, %v1119
      %v1547 = vsel %vm1520, %v1514, %v1121
      %v1548 = vsel %vm1520, %v1515, %v1123
      %v1549 = vsel %vm1520, %v1516, %v1125
      %v1550 = vsel %vm1520, %v1517, %v1127
      %v1551 = vsel %vm1520, %v1518, %v1129
      %v1552 = vsel %vm1520, %v1519, %v1131
      %vm1553 = vcmask 228352
      %v1554 = vsel %vm1553, %v1521, %v1165
      %v1555 = vsel %vm1553, %v1522, %v1167
      %v1556 = vsel %vm1553, %v1523, %v1169
      %v1557 = vsel %vm1553, %v1524, %v1171
      %v1558 = vsel %vm1553, %v1525, %v1173
      %v1559 = vsel %vm1553, %v1526, %v1175
      %v1560 = vsel %vm1553, %v1527, %v1177
      %v1561 = vsel %vm1553, %v1528, %v1179
      %v1562 = vsel %vm1553, %v1529, %v1181
      %v1563 = vsel %vm1553, %v1530, %v1183
      %v1564 = vsel %vm1553, %v1531, %v1185
      %v1565 = vsel %vm1553, %v1532, %v1187
      %v1566 = vsel %vm1553, %v1533, %v1189
      %v1567 = vsel %vm1553, %v1534, %v1191
      %v1568 = vsel %vm1553, %v1535, %v1193
      %v1569 = vsel %vm1553, %v1536, %v1195
      %v1570 = vsel %vm1553, %v1537, %v1197
      %v1571 = vsel %vm1553, %v1538, %v1199
      %v1572 = vsel %vm1553, %v1539, %v1201
      %v1573 = vsel %vm1553, %v1540, %v1203
      %v1574 = vsel %vm1553, %v1541, %v1205
      %v1575 = vsel %vm1553, %v1542, %v1207
      %v1576 = vsel %vm1553, %v1543, %v1209
      %v1577 = vsel %vm1553, %v1544, %v1211
      %v1578 = vsel %vm1553, %v1545, %v1213
      %v1579 = vsel %vm1553, %v1546, %v1215
      %v1580 = vsel %vm1553, %v1547, %v1217
      %v1581 = vsel %vm1553, %v1548, %v1219
      %v1582 = vsel %vm1553, %v1549, %v1221
      %v1583 = vsel %vm1553, %v1550, %v1223
      %v1584 = vsel %vm1553, %v1551, %v1225
      %v1585 = vsel %vm1553, %v1552, %v1227
      %vm1586 = vcmask 261120
      %v1587 = vsel %vm1586, %v1554, %v1261
      %v1588 = vsel %vm1586, %v1555, %v1263
      %v1589 = vsel %vm1586, %v1556, %v1265
      %v1590 = vsel %vm1586, %v1557, %v1267
      %v1591 = vsel %vm1586, %v1558, %v1269
      %v1592 = vsel %vm1586, %v1559, %v1271
      %v1593 = vsel %vm1586, %v1560, %v1273
      %v1594 = vsel %vm1586, %v1561, %v1275
      %v1595 = vsel %vm1586, %v1562, %v1277
      %v1596 = vsel %vm1586, %v1563, %v1279
      %v1597 = vsel %vm1586, %v1564, %v1281
      %v1598 = vsel %vm1586, %v1565, %v1283
      %v1599 = vsel %vm1586, %v1566, %v1285
      %v1600 = vsel %vm1586, %v1567, %v1287
      %v1601 = vsel %vm1586, %v1568, %v1289
      %v1602 = vsel %vm1586, %v1569, %v1291
      %v1603 = vsel %vm1586, %v1570, %v1293
      %v1604 = vsel %vm1586, %v1571, %v1295
      %v1605 = vsel %vm1586, %v1572, %v1297
      %v1606 = vsel %vm1586, %v1573, %v1299
      %v1607 = vsel %vm1586, %v1574, %v1301
      %v1608 = vsel %vm1586, %v1575, %v1303
      %v1609 = vsel %vm1586, %v1576, %v1305
      %v1610 = vsel %vm1586, %v1577, %v1307
      %v1611 = vsel %vm1586, %v1578, %v1309
      %v1612 = vsel %vm1586, %v1579, %v1311
      %v1613 = vsel %vm1586, %v1580, %v1313
      %v1614 = vsel %vm1586, %v1581, %v1315
      %v1615 = vsel %vm1586, %v1582, %v1317
      %v1616 = vsel %vm1586, %v1583, %v1319
      %v1617 = vsel %vm1586, %v1584, %v1321
      %v1618 = vsel %vm1586, %v1585, %v1323
      %v1619 = vpack.c.bf16 %v1588, %v1587
      %v1620 = vpack.c.bf16 %v1590, %v1589
      %v1621 = vpack.c.bf16 %v1592, %v1591
      %v1622 = vpack.c.bf16 %v1594, %v1593
      %v1623 = vpack.c.bf16 %v1596, %v1595
      %v1624 = vpack.c.bf16 %v1598, %v1597
      %v1625 = vpack.c.bf16 %v1600, %v1599
      %v1626 = vpack.c.bf16 %v1602, %v1601
      %v1627 = vpack.c.bf16 %v1604, %v1603
      %v1628 = vpack.c.bf16 %v1606, %v1605
      %v1629 = vpack.c.bf16 %v1608, %v1607
      %v1630 = vpack.c.bf16 %v1610, %v1609
      %v1631 = vpack.c.bf16 %v1612, %v1611
      %v1632 = vpack.c.bf16 %v1614, %v1613
      %v1633 = vpack.c.bf16 %v1616, %v1615
      %v1634 = vpack.c.bf16 %v1618, %v1617
      %v1635 = vld [vmem:[%s1] sm:$0xf]
      %v1636 = vld [vmem:[%s1 + $0x4] sm:$0xf]
      %v1637 = vld [vmem:[%s1 + $0x8] sm:$0xf]
      %v1638 = vld [vmem:[%s1 + $0xc] sm:$0xf]
      %v1639 = vld [vmem:[%s1 + $0x10] sm:$0x3]
      %v1645 = vunpack.c.l.b16 %v1635
      %v1646 = vunpack.c.l.b16 %v1636
      %v1647 = vunpack.c.l.b16 %v1637
      %v1648 = vunpack.c.l.b16 %v1638
      %v1649 = vunpack.c.l.b16 %v1639
      %v1650 = vpack.c.b16 %v1646, %v1645
      %v1651 = vpack.c.b16 %v1648, %v1647
      %v1652 = vpack.c.b16 %v1649, %v1649
      %vm1655 = vcmask 293888
      %v1657 = vsel %vm1655, %v1619, 0
      %v1660 = vsel %vm1655, %v1620, 0
      %v1663 = vsel %vm1655, %v1621, 0
      %v1666 = vsel %vm1655, %v1622, 0
      %v1669 = vsel %vm1655, %v1623, 0
      %v1672 = vsel %vm1655, %v1624, 0
      %v1675 = vsel %vm1655, %v1625, 0
      %v1678 = vsel %vm1655, %v1626, 0
      %v1681 = vsel %vm1655, %v1627, 0
      %v1684 = vsel %vm1655, %v1628, 0
      %v1687 = vsel %vm1655, %v1629, 0
      %v1690 = vsel %vm1655, %v1630, 0
      %v1693 = vsel %vm1655, %v1631, 0
      %v1696 = vsel %vm1655, %v1632, 0
      %v1699 = vsel %vm1655, %v1633, 0
      %v1702 = vsel %vm1655, %v1634, 0
      %vm1704 = vcmask 1041408
      %v1706 = vsel %vm1704, %v1652, 0
      %1708 = vmatprep.subr.bf16.mxu0 0
      %1709 = vmatpush1.bf16.msra.mxu0 0
      %1710 = vmatprep.subr.bf16.mxu0 0
      %1711 = vmatpush1.bf16.msra.mxu0 0
      %1712 = vmatprep.subr.bf16.mxu0 0
      %1713 = vmatpush1.bf16.msra.mxu0 0
      %1714 = vmatprep.subr.bf16.mxu0 0
      %1715 = vmatpush1.bf16.msra.mxu0 0
      %1716 = vmatprep.subr.bf16.mxu0 0
      %1717 = vmatpush1.bf16.msra.mxu0 0
      %1718 = vmatprep.subr.bf16.mxu0 0
      %1719 = vmatpush1.bf16.msra.mxu0 %v1706
      %1720 = vmatprep.subr.bf16.mxu0 0
      %1721 = vmatpush1.bf16.msra.mxu0 %v1651
      %1722 = vmatprep.subr.bf16.mxu0 0
      %1723 = vmatpush1.bf16.msra.mxu0 %v1650
      %1724 = vmatprep.subr.bf16.mxu0 0
      %1725 = vmatpush2.bf16.msra.mxu0 0
      %1726 = vmatprep.subr.bf16.mxu0 0
      %1727 = vmatpush2.bf16.msra.mxu0 0
      %1728 = vmatprep.subr.bf16.mxu0 0
      %1729 = vmatpush2.bf16.msra.mxu0 0
      %1730 = vmatprep.subr.bf16.mxu0 0
      %1731 = vmatpush2.bf16.msra.mxu0 0
      %1732 = vmatprep.subr.bf16.mxu0 0
      %1733 = vmatpush2.bf16.msra.mxu0 0
      %1734 = vmatprep.subr.bf16.mxu0 0
      %1735 = vmatpush2.bf16.msra.mxu0 0
      %1736 = vmatprep.subr.bf16.mxu0 0
      %1737 = vmatpush2.bf16.msra.mxu0 0
      %1738 = vmatprep.subr.bf16.mxu0 0
      %1739 = vmatpush2.bf16.msra.mxu0 0
      %1740 = vmatprep.mubr.bf16.mxu0 0
      %1741 = vmatmul.mubr.bf16.gmra.mxu0 %v1657
      %v1742 = vpop.f32.mrf.mxu0
      %v1743 = vadd.f32 0.0, %v1742
      %v1744 = vpop.f32.mrf.mxu0
      %v1745 = vpop.f32.mrf.mxu0
      %v1746 = vadd.f32 0.0, %v1745
      %v1747 = vpop.f32.mrf.mxu0
      %1748 = vmatprep.mubr.bf16.mxu0 0
      %1749 = vmatmul.mubr.bf16.gmra.mxu0 %v1660
      %v1750 = vpop.f32.mrf.mxu0
      %v1751 = vadd.f32 0.0, %v1750
      %v1752 = vpop.f32.mrf.mxu0
      %v1753 = vpop.f32.mrf.mxu0
      %v1754 = vadd.f32 0.0, %v1753
      %v1755 = vpop.f32.mrf.mxu0
      %1756 = vmatprep.mubr.bf16.mxu0 0
      %1757 = vmatmul.mubr.bf16.gmra.mxu0 %v1663
      %v1758 = vpop.f32.mrf.mxu0
      %v1759 = vadd.f32 0.0, %v1758
      %v1760 = vpop.f32.mrf.mxu0
      %v1761 = vpop.f32.mrf.mxu0
      %v1762 = vadd.f32 0.0, %v1761
      %v1763 = vpop.f32.mrf.mxu0
      %1764 = vmatprep.mubr.bf16.mxu0 0
      %1765 = vmatmul.mubr.bf16.gmra.mxu0 %v1666
      %v1766 = vpop.f32.mrf.mxu0
      %v1767 = vadd.f32 0.0, %v1766
      %v1768 = vpop.f32.mrf.mxu0
      %v1769 = vpop.f32.mrf.mxu0
      %v1770 = vadd.f32 0.0, %v1769
      %v1771 = vpop.f32.mrf.mxu0
      %1772 = vmatprep.mubr.bf16.mxu0 0
      %1773 = vmatmul.mubr.bf16.gmra.mxu0 %v1669
      %v1774 = vpop.f32.mrf.mxu0
      %v1775 = vadd.f32 0.0, %v1774
      %v1776 = vpop.f32.mrf.mxu0
      %v1777 = vpop.f32.mrf.mxu0
      %v1778 = vadd.f32 0.0, %v1777
      %v1779 = vpop.f32.mrf.mxu0
      %1780 = vmatprep.mubr.bf16.mxu0 0
      %1781 = vmatmul.mubr.bf16.gmra.mxu0 %v1672
      %v1782 = vpop.f32.mrf.mxu0
      %v1783 = vadd.f32 0.0, %v1782
      %v1784 = vpop.f32.mrf.mxu0
      %v1785 = vpop.f32.mrf.mxu0
      %v1786 = vadd.f32 0.0, %v1785
      %v1787 = vpop.f32.mrf.mxu0
      %1788 = vmatprep.mubr.bf16.mxu0 0
      %1789 = vmatmul.mubr.bf16.gmra.mxu0 %v1675
      %v1790 = vpop.f32.mrf.mxu0
      %v1791 = vadd.f32 0.0, %v1790
      %v1792 = vpop.f32.mrf.mxu0
      %v1793 = vpop.f32.mrf.mxu0
      %v1794 = vadd.f32 0.0, %v1793
      %v1795 = vpop.f32.mrf.mxu0
      %1796 = vmatprep.mubr.bf16.mxu0 0
      %1797 = vmatmul.mubr.bf16.gmra.mxu0 %v1678
      %v1798 = vpop.f32.mrf.mxu0
      %v1799 = vadd.f32 0.0, %v1798
      %v1800 = vpop.f32.mrf.mxu0
      %v1801 = vpop.f32.mrf.mxu0
      %v1802 = vadd.f32 0.0, %v1801
      %v1803 = vpop.f32.mrf.mxu0
      %1804 = vmatprep.mubr.bf16.mxu0 0
      %1805 = vmatmul.mubr.bf16.gmra.mxu0 %v1681
      %v1806 = vpop.f32.mrf.mxu0
      %v1807 = vadd.f32 0.0, %v1806
      %v1808 = vpop.f32.mrf.mxu0
      %v1809 = vpop.f32.mrf.mxu0
      %v1810 = vadd.f32 0.0, %v1809
      %v1811 = vpop.f32.mrf.mxu0
      %1812 = vmatprep.mubr.bf16.mxu0 0
      %1813 = vmatmul.mubr.bf16.gmra.mxu0 %v1684
      %v1814 = vpop.f32.mrf.mxu0
      %v1815 = vadd.f32 0.0, %v1814
      %v1816 = vpop.f32.mrf.mxu0
      %v1817 = vpop.f32.mrf.mxu0
      %v1818 = vadd.f32 0.0, %v1817
      %v1819 = vpop.f32.mrf.mxu0
      %1820 = vmatprep.mubr.bf16.mxu0 0
      %1821 = vmatmul.mubr.bf16.gmra.mxu0 %v1687
      %v1822 = vpop.f32.mrf.mxu0
      %v1823 = vadd.f32 0.0, %v1822
      %v1824 = vpop.f32.mrf.mxu0
      %v1825 = vpop.f32.mrf.mxu0
      %v1826 = vadd.f32 0.0, %v1825
      %v1827 = vpop.f32.mrf.mxu0
      %1828 = vmatprep.mubr.bf16.mxu0 0
      %1829 = vmatmul.mubr.bf16.gmra.mxu0 %v1690
      %v1830 = vpop.f32.mrf.mxu0
      %v1831 = vadd.f32 0.0, %v1830
      %v1832 = vpop.f32.mrf.mxu0
      %v1833 = vpop.f32.mrf.mxu0
      %v1834 = vadd.f32 0.0, %v1833
      %v1835 = vpop.f32.mrf.mxu0
      %1836 = vmatprep.mubr.bf16.mxu0 0
      %1837 = vmatmul.mubr.bf16.gmra.mxu0 %v1693
      %v1838 = vpop.f32.mrf.mxu0
      %v1839 = vadd.f32 0.0, %v1838
      %v1840 = vpop.f32.mrf.mxu0
      %v1841 = vpop.f32.mrf.mxu0
      %v1842 = vadd.f32 0.0, %v1841
      %v1843 = vpop.f32.mrf.mxu0
      %1844 = vmatprep.mubr.bf16.mxu0 0
      %1845 = vmatmul.mubr.bf16.gmra.mxu0 %v1696
      %v1846 = vpop.f32.mrf.mxu0
      %v1847 = vadd.f32 0.0, %v1846
      %v1848 = vpop.f32.mrf.mxu0
      %v1849 = vpop.f32.mrf.mxu0
      %v1850 = vadd.f32 0.0, %v1849
      %v1851 = vpop.f32.mrf.mxu0
      %1852 = vmatprep.mubr.bf16.mxu0 0
      %1853 = vmatmul.mubr.bf16.gmra.mxu0 %v1699
      %v1854 = vpop.f32.mrf.mxu0
      %v1855 = vadd.f32 0.0, %v1854
      %v1856 = vpop.f32.mrf.mxu0
      %v1857 = vpop.f32.mrf.mxu0
      %v1858 = vadd.f32 0.0, %v1857
      %v1859 = vpop.f32.mrf.mxu0
      %1860 = vmatprep.mubr.bf16.mxu0 0
      %1861 = vmatmul.mubr.bf16.gmra.mxu0 %v1702
      %v1862 = vpop.f32.mrf.mxu0
      %v1863 = vadd.f32 0.0, %v1862
      %v1864 = vpop.f32.mrf.mxu0
      %v1865 = vpop.f32.mrf.mxu0
      %v1866 = vadd.f32 0.0, %v1865
      %v1867 = vpop.f32.mrf.mxu0
      %1868 = vdwg.mxu0
      %v1869 = vsel %vm1388, %v1743, 0.0
      %v1870 = vsel %vm1388, %v1746, 0.0
      %v1871 = vadd.f32 %v1869, %v1870
      %v1872 = vsel %vm1388, %v1751, 0.0
      %v1873 = vadd.f32 %v1871, %v1872
      %v1874 = vsel %vm1388, %v1754, 0.0
      %v1875 = vadd.f32 %v1873, %v1874
      %v1876 = vsel %vm1388, %v1759, 0.0
      %v1877 = vadd.f32 %v1875, %v1876
      %v1878 = vsel %vm1388, %v1762, 0.0
      %v1879 = vadd.f32 %v1877, %v1878
      %v1880 = vsel %vm1388, %v1767, 0.0
      %v1881 = vadd.f32 %v1879, %v1880
      %v1882 = vsel %vm1388, %v1770, 0.0
      %v1883 = vadd.f32 %v1881, %v1882
      %v1884 = vsel %vm1388, %v1775, 0.0
      %v1885 = vadd.f32 %v1883, %v1884
      %v1886 = vsel %vm1388, %v1778, 0.0
      %v1887 = vadd.f32 %v1885, %v1886
      %v1888 = vsel %vm1388, %v1783, 0.0
      %v1889 = vadd.f32 %v1887, %v1888
      %v1890 = vsel %vm1388, %v1786, 0.0
      %v1891 = vadd.f32 %v1889, %v1890
      %v1892 = vsel %vm1388, %v1791, 0.0
      %v1893 = vadd.f32 %v1891, %v1892
      %v1894 = vsel %vm1388, %v1794, 0.0
      %v1895 = vadd.f32 %v1893, %v1894
      %v1896 = vsel %vm1388, %v1799, 0.0
      %v1897 = vadd.f32 %v1895, %v1896
      %v1898 = vsel %vm1388, %v1802, 0.0
      %v1899 = vadd.f32 %v1897, %v1898
      %v1900 = vsel %vm1388, %v1807, 0.0
      %v1901 = vadd.f32 %v1899, %v1900
      %v1902 = vsel %vm1388, %v1810, 0.0
      %v1903 = vadd.f32 %v1901, %v1902
      %v1904 = vsel %vm1388, %v1815, 0.0
      %v1905 = vadd.f32 %v1903, %v1904
      %v1906 = vsel %vm1388, %v1818, 0.0
      %v1907 = vadd.f32 %v1905, %v1906
      %v1908 = vsel %vm1388, %v1823, 0.0
      %v1909 = vadd.f32 %v1907, %v1908
      %v1910 = vsel %vm1388, %v1826, 0.0
      %v1911 = vadd.f32 %v1909, %v1910
      %v1912 = vsel %vm1388, %v1831, 0.0
      %v1913 = vadd.f32 %v1911, %v1912
      %v1914 = vsel %vm1388, %v1834, 0.0
      %v1915 = vadd.f32 %v1913, %v1914
      %v1916 = vsel %vm1388, %v1839, 0.0
      %v1917 = vadd.f32 %v1915, %v1916
      %v1918 = vsel %vm1388, %v1842, 0.0
      %v1919 = vadd.f32 %v1917, %v1918
      %v1920 = vsel %vm1388, %v1847, 0.0
      %v1921 = vadd.f32 %v1919, %v1920
      %v1922 = vsel %vm1388, %v1850, 0.0
      %v1923 = vadd.f32 %v1921, %v1922
      %v1924 = vsel %vm1388, %v1855, 0.0
      %v1925 = vadd.f32 %v1923, %v1924
      %v1926 = vsel %vm1388, %v1858, 0.0
      %v1927 = vadd.f32 %v1925, %v1926
      %v1928 = vsel %vm1388, %v1863, 0.0
      %v1929 = vadd.f32 %v1927, %v1928
      %v1930 = vsel %vm1388, %v1866, 0.0
      %v1931 = vadd.f32 %v1929, %v1930
      %v1932 = vrot.slane %v1931, 4
      %v1933 = vadd.f32 %v1931, %v1932
      %v1934 = vrot.slane %v1933, 2
      %v1935 = vadd.f32 %v1933, %v1934
      %v1936 = vrot.slane %v1935, 1
      %v1937 = vadd.f32 %v1935, %v1936
      %v1938 = vmul.f32 %v1743, %v1743
      %v1939 = vmul.f32 %v1746, %v1746
      %v1940 = vmul.f32 %v1751, %v1751
      %v1941 = vmul.f32 %v1754, %v1754
      %v1942 = vmul.f32 %v1759, %v1759
      %v1943 = vmul.f32 %v1762, %v1762
      %v1944 = vmul.f32 %v1767, %v1767
      %v1945 = vmul.f32 %v1770, %v1770
      %v1946 = vmul.f32 %v1775, %v1775
      %v1947 = vmul.f32 %v1778, %v1778
      %v1948 = vmul.f32 %v1783, %v1783
      %v1949 = vmul.f32 %v1786, %v1786
      %v1950 = vmul.f32 %v1791, %v1791
      %v1951 = vmul.f32 %v1794, %v1794
      %v1952 = vmul.f32 %v1799, %v1799
      %v1953 = vmul.f32 %v1802, %v1802
      %v1954 = vmul.f32 %v1807, %v1807
      %v1955 = vmul.f32 %v1810, %v1810
      %v1956 = vmul.f32 %v1815, %v1815
      %v1957 = vmul.f32 %v1818, %v1818
      %v1958 = vmul.f32 %v1823, %v1823
      %v1959 = vmul.f32 %v1826, %v1826
      %v1960 = vmul.f32 %v1831, %v1831
      %v1961 = vmul.f32 %v1834, %v1834
      %v1962 = vmul.f32 %v1839, %v1839
      %v1963 = vmul.f32 %v1842, %v1842
      %v1964 = vmul.f32 %v1847, %v1847
      %v1965 = vmul.f32 %v1850, %v1850
      %v1966 = vmul.f32 %v1855, %v1855
      %v1967 = vmul.f32 %v1858, %v1858
      %v1968 = vmul.f32 %v1863, %v1863
      %v1969 = vmul.f32 %v1866, %v1866
      %v1970 = vsel %vm1388, %v1938, 0.0
      %v1971 = vsel %vm1388, %v1939, 0.0
      %v1972 = vadd.f32 %v1970, %v1971
      %v1973 = vsel %vm1388, %v1940, 0.0
      %v1974 = vadd.f32 %v1972, %v1973
      %v1975 = vsel %vm1388, %v1941, 0.0
      %v1976 = vadd.f32 %v1974, %v1975
      %v1977 = vsel %vm1388, %v1942, 0.0
      %v1978 = vadd.f32 %v1976, %v1977
      %v1979 = vsel %vm1388, %v1943, 0.0
      %v1980 = vadd.f32 %v1978, %v1979
      %v1981 = vsel %vm1388, %v1944, 0.0
      %v1982 = vadd.f32 %v1980, %v1981
      %v1983 = vsel %vm1388, %v1945, 0.0
      %v1984 = vadd.f32 %v1982, %v1983
      %v1985 = vsel %vm1388, %v1946, 0.0
      %v1986 = vadd.f32 %v1984, %v1985
      %v1987 = vsel %vm1388, %v1947, 0.0
      %v1988 = vadd.f32 %v1986, %v1987
      %v1989 = vsel %vm1388, %v1948, 0.0
      %v1990 = vadd.f32 %v1988, %v1989
      %v1991 = vsel %vm1388, %v1949, 0.0
      %v1992 = vadd.f32 %v1990, %v1991
      %v1993 = vsel %vm1388, %v1950, 0.0
      %v1994 = vadd.f32 %v1992, %v1993
      %v1995 = vsel %vm1388, %v1951, 0.0
      %v1996 = vadd.f32 %v1994, %v1995
      %v1997 = vsel %vm1388, %v1952, 0.0
      %v1998 = vadd.f32 %v1996, %v1997
      %v1999 = vsel %vm1388, %v1953, 0.0
      %v2000 = vadd.f32 %v1998, %v1999
      %v2001 = vsel %vm1388, %v1954, 0.0
      %v2002 = vadd.f32 %v2000, %v2001
      %v2003 = vsel %vm1388, %v1955, 0.0
      %v2004 = vadd.f32 %v2002, %v2003
      %v2005 = vsel %vm1388, %v1956, 0.0
      %v2006 = vadd.f32 %v2004, %v2005
      %v2007 = vsel %vm1388, %v1957, 0.0
      %v2008 = vadd.f32 %v2006, %v2007
      %v2009 = vsel %vm1388, %v1958, 0.0
      %v2010 = vadd.f32 %v2008, %v2009
      %v2011 = vsel %vm1388, %v1959, 0.0
      %v2012 = vadd.f32 %v2010, %v2011
      %v2013 = vsel %vm1388, %v1960, 0.0
      %v2014 = vadd.f32 %v2012, %v2013
      %v2015 = vsel %vm1388, %v1961, 0.0
      %v2016 = vadd.f32 %v2014, %v2015
      %v2017 = vsel %vm1388, %v1962, 0.0
      %v2018 = vadd.f32 %v2016, %v2017
      %v2019 = vsel %vm1388, %v1963, 0.0
      %v2020 = vadd.f32 %v2018, %v2019
      %v2021 = vsel %vm1388, %v1964, 0.0
      %v2022 = vadd.f32 %v2020, %v2021
      %v2023 = vsel %vm1388, %v1965, 0.0
      %v2024 = vadd.f32 %v2022, %v2023
      %v2025 = vsel %vm1388, %v1966, 0.0
      %v2026 = vadd.f32 %v2024, %v2025
      %v2027 = vsel %vm1388, %v1967, 0.0
      %v2028 = vadd.f32 %v2026, %v2027
      %v2029 = vsel %vm1388, %v1968, 0.0
      %v2030 = vadd.f32 %v2028, %v2029
      %v2031 = vsel %vm1388, %v1969, 0.0
      %v2032 = vadd.f32 %v2030, %v2031
      %v2033 = vrot.slane %v2032, 4
      %v2034 = vadd.f32 %v2032, %v2033
      %v2035 = vrot.slane %v2034, 2
      %v2036 = vadd.f32 %v2034, %v2035
      %v2037 = vrot.slane %v2036, 1
      %v2038 = vadd.f32 %v2036, %v2037
      %v2039 = vmul.f32 %v1937, 0.00390625
      %v2040 = vmul.f32 %v2038, 0.00390625
      %v2041 = vmul.f32 %v2039, %v2039
      %v2042 = vsub.f32 %v2040, %v2041
      %v2043 = vsub.f32 %v1743, %v2039
      %v2044 = vsub.f32 %v1746, %v2039
      %v2045 = vsub.f32 %v1751, %v2039
      %v2046 = vsub.f32 %v1754, %v2039
      %v2047 = vsub.f32 %v1759, %v2039
      %v2048 = vsub.f32 %v1762, %v2039
      %v2049 = vsub.f32 %v1767, %v2039
      %v2050 = vsub.f32 %v1770, %v2039
      %v2051 = vsub.f32 %v1775, %v2039
      %v2052 = vsub.f32 %v1778, %v2039
      %v2053 = vsub.f32 %v1783, %v2039
      %v2054 = vsub.f32 %v1786, %v2039
      %v2055 = vsub.f32 %v1791, %v2039
      %v2056 = vsub.f32 %v1794, %v2039
      %v2057 = vsub.f32 %v1799, %v2039
      %v2058 = vsub.f32 %v1802, %v2039
      %v2059 = vsub.f32 %v1807, %v2039
      %v2060 = vsub.f32 %v1810, %v2039
      %v2061 = vsub.f32 %v1815, %v2039
      %v2062 = vsub.f32 %v1818, %v2039
      %v2063 = vsub.f32 %v1823, %v2039
      %v2064 = vsub.f32 %v1826, %v2039
      %v2065 = vsub.f32 %v1831, %v2039
      %v2066 = vsub.f32 %v1834, %v2039
      %v2067 = vsub.f32 %v1839, %v2039
      %v2068 = vsub.f32 %v1842, %v2039
      %v2069 = vsub.f32 %v1847, %v2039
      %v2070 = vsub.f32 %v1850, %v2039
      %v2071 = vsub.f32 %v1855, %v2039
      %v2072 = vsub.f32 %v1858, %v2039
      %v2073 = vsub.f32 %v1863, %v2039
      %v2074 = vsub.f32 %v1866, %v2039
      %v2075 = vadd.f32 %v2042, 1e-05
      %v2076 = vrsqrt.pop %v2075
      %v2077 = vmul.f32 %v2043, %v2076
      %v2078 = vmul.f32 %v2044, %v2076
      %v2079 = vmul.f32 %v2045, %v2076
      %v2080 = vmul.f32 %v2046, %v2076
      %v2081 = vmul.f32 %v2047, %v2076
      %v2082 = vmul.f32 %v2048, %v2076
      %v2083 = vmul.f32 %v2049, %v2076
      %v2084 = vmul.f32 %v2050, %v2076
      %v2085 = vmul.f32 %v2051, %v2076
      %v2086 = vmul.f32 %v2052, %v2076
      %v2087 = vmul.f32 %v2053, %v2076
      %v2088 = vmul.f32 %v2054, %v2076
      %v2089 = vmul.f32 %v2055, %v2076
      %v2090 = vmul.f32 %v2056, %v2076
      %v2091 = vmul.f32 %v2057, %v2076
      %v2092 = vmul.f32 %v2058, %v2076
      %v2093 = vmul.f32 %v2059, %v2076
      %v2094 = vmul.f32 %v2060, %v2076
      %v2095 = vmul.f32 %v2061, %v2076
      %v2096 = vmul.f32 %v2062, %v2076
      %v2097 = vmul.f32 %v2063, %v2076
      %v2098 = vmul.f32 %v2064, %v2076
      %v2099 = vmul.f32 %v2065, %v2076
      %v2100 = vmul.f32 %v2066, %v2076
      %v2101 = vmul.f32 %v2067, %v2076
      %v2102 = vmul.f32 %v2068, %v2076
      %v2103 = vmul.f32 %v2069, %v2076
      %v2104 = vmul.f32 %v2070, %v2076
      %v2105 = vmul.f32 %v2071, %v2076
      %v2106 = vmul.f32 %v2072, %v2076
      %v2107 = vmul.f32 %v2073, %v2076
      %v2108 = vmul.f32 %v2074, %v2076
      %vm2109 = vcmp.gt.f32.partialorder %v2077, 0.0
      %vm2110 = vcmp.gt.f32.partialorder %v2078, 0.0
      %vm2111 = vcmp.gt.f32.partialorder %v2079, 0.0
      %vm2112 = vcmp.gt.f32.partialorder %v2080, 0.0
      %vm2113 = vcmp.gt.f32.partialorder %v2081, 0.0
      %vm2114 = vcmp.gt.f32.partialorder %v2082, 0.0
      %vm2115 = vcmp.gt.f32.partialorder %v2083, 0.0
      %vm2116 = vcmp.gt.f32.partialorder %v2084, 0.0
      %vm2117 = vcmp.gt.f32.partialorder %v2085, 0.0
      %vm2118 = vcmp.gt.f32.partialorder %v2086, 0.0
      %vm2119 = vcmp.gt.f32.partialorder %v2087, 0.0
      %vm2120 = vcmp.gt.f32.partialorder %v2088, 0.0
      %vm2121 = vcmp.gt.f32.partialorder %v2089, 0.0
      %vm2122 = vcmp.gt.f32.partialorder %v2090, 0.0
      %vm2123 = vcmp.gt.f32.partialorder %v2091, 0.0
      %vm2124 = vcmp.gt.f32.partialorder %v2092, 0.0
      %vm2125 = vcmp.gt.f32.partialorder %v2093, 0.0
      %vm2126 = vcmp.gt.f32.partialorder %v2094, 0.0
      %vm2127 = vcmp.gt.f32.partialorder %v2095, 0.0
      %vm2128 = vcmp.gt.f32.partialorder %v2096, 0.0
      %vm2129 = vcmp.gt.f32.partialorder %v2097, 0.0
      %vm2130 = vcmp.gt.f32.partialorder %v2098, 0.0
      %vm2131 = vcmp.gt.f32.partialorder %v2099, 0.0
      %vm2132 = vcmp.gt.f32.partialorder %v2100, 0.0
      %vm2133 = vcmp.gt.f32.partialorder %v2101, 0.0
      %vm2134 = vcmp.gt.f32.partialorder %v2102, 0.0
      %vm2135 = vcmp.gt.f32.partialorder %v2103, 0.0
      %vm2136 = vcmp.gt.f32.partialorder %v2104, 0.0
      %vm2137 = vcmp.gt.f32.partialorder %v2105, 0.0
      %vm2138 = vcmp.gt.f32.partialorder %v2106, 0.0
      %vm2139 = vcmp.gt.f32.partialorder %v2107, 0.0
      %vm2140 = vcmp.gt.f32.partialorder %v2108, 0.0
      %v2141 = vmul.f32 %v2077, 0.2
      %v2142 = vmul.f32 %v2078, 0.2
      %v2143 = vmul.f32 %v2079, 0.2
      %v2144 = vmul.f32 %v2080, 0.2
      %v2145 = vmul.f32 %v2081, 0.2
      %v2146 = vmul.f32 %v2082, 0.2
      %v2147 = vmul.f32 %v2083, 0.2
      %v2148 = vmul.f32 %v2084, 0.2
      %v2149 = vmul.f32 %v2085, 0.2
      %v2150 = vmul.f32 %v2086, 0.2
      %v2151 = vmul.f32 %v2087, 0.2
      %v2152 = vmul.f32 %v2088, 0.2
      %v2153 = vmul.f32 %v2089, 0.2
      %v2154 = vmul.f32 %v2090, 0.2
      %v2155 = vmul.f32 %v2091, 0.2
      %v2156 = vmul.f32 %v2092, 0.2
      %v2157 = vmul.f32 %v2093, 0.2
      %v2158 = vmul.f32 %v2094, 0.2
      %v2159 = vmul.f32 %v2095, 0.2
      %v2160 = vmul.f32 %v2096, 0.2
      %v2161 = vmul.f32 %v2097, 0.2
      %v2162 = vmul.f32 %v2098, 0.2
      %v2163 = vmul.f32 %v2099, 0.2
      %v2164 = vmul.f32 %v2100, 0.2
      %v2165 = vmul.f32 %v2101, 0.2
      %v2166 = vmul.f32 %v2102, 0.2
      %v2167 = vmul.f32 %v2103, 0.2
      %v2168 = vmul.f32 %v2104, 0.2
      %v2169 = vmul.f32 %v2105, 0.2
      %v2170 = vmul.f32 %v2106, 0.2
      %v2171 = vmul.f32 %v2107, 0.2
      %v2172 = vmul.f32 %v2108, 0.2
      %v2173 = vsel %vm2109, %v2077, %v2141
      %v2174 = vsel %vm2110, %v2078, %v2142
      %v2175 = vsel %vm2111, %v2079, %v2143
      %v2176 = vsel %vm2112, %v2080, %v2144
      %v2177 = vsel %vm2113, %v2081, %v2145
      %v2178 = vsel %vm2114, %v2082, %v2146
      %v2179 = vsel %vm2115, %v2083, %v2147
      %v2180 = vsel %vm2116, %v2084, %v2148
      %v2181 = vsel %vm2117, %v2085, %v2149
      %v2182 = vsel %vm2118, %v2086, %v2150
      %v2183 = vsel %vm2119, %v2087, %v2151
      %v2184 = vsel %vm2120, %v2088, %v2152
      %v2185 = vsel %vm2121, %v2089, %v2153
      %v2186 = vsel %vm2122, %v2090, %v2154
      %v2187 = vsel %vm2123, %v2091, %v2155
      %v2188 = vsel %vm2124, %v2092, %v2156
      %v2189 = vsel %vm2125, %v2093, %v2157
      %v2190 = vsel %vm2126, %v2094, %v2158
      %v2191 = vsel %vm2127, %v2095, %v2159
      %v2192 = vsel %vm2128, %v2096, %v2160
      %v2193 = vsel %vm2129, %v2097, %v2161
      %v2194 = vsel %vm2130, %v2098, %v2162
      %v2195 = vsel %vm2131, %v2099, %v2163
      %v2196 = vsel %vm2132, %v2100, %v2164
      %v2197 = vsel %vm2133, %v2101, %v2165
      %v2198 = vsel %vm2134, %v2102, %v2166
      %v2199 = vsel %vm2135, %v2103, %v2167
      %v2200 = vsel %vm2136, %v2104, %v2168
      %v2201 = vsel %vm2137, %v2105, %v2169
      %v2202 = vsel %vm2138, %v2106, %v2170
      %v2203 = vsel %vm2139, %v2107, %v2171
      %v2204 = vsel %vm2140, %v2108, %v2172
      %2205 = vst.msk [vmem:[%s143] sm:$0xff] %vm1388, %v2173
      %2206 = vst.msk [vmem:[%s143 + $0x8] sm:$0xff] %vm1388, %v2174
      %2207 = vst.msk [vmem:[%s143 + $0x10] sm:$0xff] %vm1388, %v2175
      %2208 = vst.msk [vmem:[%s143 + $0x18] sm:$0xff] %vm1388, %v2176
      %2209 = vst.msk [vmem:[%s143 + $0x20] sm:$0xff] %vm1388, %v2177
      %2210 = vst.msk [vmem:[%s143 + $0x28] sm:$0xff] %vm1388, %v2178
      %2211 = vst.msk [vmem:[%s143 + $0x30] sm:$0xff] %vm1388, %v2179
      %2212 = vst.msk [vmem:[%s143 + $0x38] sm:$0xff] %vm1388, %v2180
      %2213 = vst.msk [vmem:[%s143 + $0x40] sm:$0xff] %vm1388, %v2181
      %2214 = vst.msk [vmem:[%s143 + $0x48] sm:$0xff] %vm1388, %v2182
      %2215 = vst.msk [vmem:[%s143 + $0x50] sm:$0xff] %vm1388, %v2183
      %2216 = vst.msk [vmem:[%s143 + $0x58] sm:$0xff] %vm1388, %v2184
      %2217 = vst.msk [vmem:[%s143 + $0x60] sm:$0xff] %vm1388, %v2185
      %2218 = vst.msk [vmem:[%s143 + $0x68] sm:$0xff] %vm1388, %v2186
      %2219 = vst.msk [vmem:[%s143 + $0x70] sm:$0xff] %vm1388, %v2187
      %2220 = vst.msk [vmem:[%s143 + $0x78] sm:$0xff] %vm1388, %v2188
      %2221 = vst.msk [vmem:[%s143 + $0x80] sm:$0xff] %vm1388, %v2189
      %2222 = vst.msk [vmem:[%s143 + $0x88] sm:$0xff] %vm1388, %v2190
      %2223 = vst.msk [vmem:[%s143 + $0x90] sm:$0xff] %vm1388, %v2191
      %2224 = vst.msk [vmem:[%s143 + $0x98] sm:$0xff] %vm1388, %v2192
      %2225 = vst.msk [vmem:[%s143 + $0xa0] sm:$0xff] %vm1388, %v2193
      %2226 = vst.msk [vmem:[%s143 + $0xa8] sm:$0xff] %vm1388, %v2194
      %2227 = vst.msk [vmem:[%s143 + $0xb0] sm:$0xff] %vm1388, %v2195
      %2228 = vst.msk [vmem:[%s143 + $0xb8] sm:$0xff] %vm1388, %v2196
      %2229 = vst.msk [vmem:[%s143 + $0xc0] sm:$0xff] %vm1388, %v2197
      %2230 = vst.msk [vmem:[%s143 + $0xc8] sm:$0xff] %vm1388, %v2198
      %2231 = vst.msk [vmem:[%s143 + $0xd0] sm:$0xff] %vm1388, %v2199
      %2232 = vst.msk [vmem:[%s143 + $0xd8] sm:$0xff] %vm1388, %v2200
      %2233 = vst.msk [vmem:[%s143 + $0xe0] sm:$0xff] %vm1388, %v2201
      %2234 = vst.msk [vmem:[%s143 + $0xe8] sm:$0xff] %vm1388, %v2202
      %2235 = vst.msk [vmem:[%s143 + $0xf0] sm:$0xff] %vm1388, %v2203
      %2236 = vst.msk [vmem:[%s143 + $0xf8] sm:$0xff] %vm1388, %v2204
      %p2237 = scmp.lt.s32.totalorder %s13, 1
      %s2238 = scalar_select %p2237, %s13, 1
      %s2239 = smul.addr %s2238, 32
      %s2240 = smul.addr %s2239, 8
      %s2241 = scalar_lea.vmem %s2, %s2240
      // Predicated region
      $region29: #{tpu_custom_call.1} parent=27 // pred_check
        %p2242 = pneg %p78
      $region30: #{tpu_custom_call.1} parent=27 // pred_check_branch
        %2244 = sbr.rel (%p2242) target = $region32
      $region31: #{tpu_custom_call.1} parent=27 // pred_region
        _
      $region32: #{tpu_custom_call.1} parent=27 // pred_fallthru
        _
    $region28: #{tpu_custom_call.1} parent=5 // pred_fallthru
      _
    %p2245 = scmp.le.s32.totalorder 2, %s8
    // Predicated region
    $region33: #{tpu_custom_call.1} parent=5 // pred_check
      %p2246 = pneg %p2245
    $region34: #{tpu_custom_call.1} parent=5 // pred_check_branch
      %2248 = sbr.rel (%p2246) target = $region36
    $region35: #{tpu_custom_call.1} parent=5 // pred_region
      %s2249 = ssub.s32 %s8, 2
      // Predicated region
      $region37: #{tpu_custom_call.1} parent=35 // pred_check
        %p2250 = pneg %p84
      $region38: #{tpu_custom_call.1} parent=35 // pred_check_branch
        %2252 = sbr.rel (%p2250) target = $region40
      $region39: #{tpu_custom_call.1} parent=35 // pred_region
        %p2253 = scmp.lt.s32.totalorder %s14, 1
        %s2254 = scalar_select %p2253, %s14, 1
        %s2255 = smul.addr %s2254, 32
        %s2256 = smul.addr %s2255, 8
        %s2257 = scalar_lea.vmem %s2, %s2256
      $region40: #{tpu_custom_call.1} parent=35 // pred_fallthru
        _
    $region36: #{tpu_custom_call.1} parent=5 // pred_fallthru
      _
  $region6: #{tpu_custom_call.1} parent=0 // loop_footer
    %s12 = sadd.s32 1, %s8
  $region7: #{tpu_custom_call.1} parent=0 // loop_footer_branch
    %7 = sbr.rel target = $region3
  $region8: #{tpu_custom_call.1} parent=0 // loop_exit
    _

</llo_original>
